<compile_context>
chip_gen: v7x
topology: tpu7x:2x2x1
jax: 0.10.0
libtpu: 0.0.40
codegen_flags: <defaults>
</compile_context>

<pallas_src>
import functools

import jax
import jax.numpy as jnp
from jax.experimental import pallas as pl
from jax.experimental.pallas import tpu as pltpu

# bf16 matmul inputs (f32 accumulation).  Set to jnp.float32 for bit-faithful
# f32 matmuls (tolerance in __main__ assumes bf16).
MATMUL_DTYPE = jnp.bfloat16


# -----------------------------------------------------------------------------
# Weight-layout helpers (wrapper-side, plain jnp, all tiny / one-off)
#
# Fused gate/direction column layout used by the kernel (last dim = 8H):
#     [ i_f | i_b | f_f | f_b | g_f | g_b | o_f | o_b ]     (H lanes each)
# Fused hidden / cell state layout (last dim = 2H lanes):
#     [ h_f | h_b ]
# so each per-gate 2H-wide slice of the pre-activations lines up lane-for-lane
# with the state.  The backward ("_b") half walks time in reverse: at kernel
# step s its lanes refer to original time T-1-s.
# -----------------------------------------------------------------------------
def _interleave_gates(g_fwd, g_bwd, H):
    """(..., 4H) per direction (torch gate order i,f,g,o) -> (..., 8H) fused layout."""
    parts = []
    for k in range(4):
        parts.append(g_fwd[..., k * H:(k + 1) * H])
        parts.append(g_bwd[..., k * H:(k + 1) * H])
    return jnp.concatenate(parts, axis=-1)


def _gate_prescale(w, H):
    """Pre-scale the sigmoid gates' (i, f, o) columns by 0.5 so ONE tanh pass in
    the kernel yields tanh for g and sigmoid (= 0.5*tanh(x/2)+0.5) for i/f/o."""
    scale = jnp.concatenate([
        jnp.full((4 * H,), 0.5, w.dtype),   # i_f, i_b, f_f, f_b
        jnp.ones((2 * H,), w.dtype),        # g_f, g_b
        jnp.full((2 * H,), 0.5, w.dtype),   # o_f, o_b
    ])
    return w * scale


def _stack_whh(whh_f, whh_b, H):
    """(H, 4H) x 2 -> block-diagonal (2H, 8H): fwd h-features feed only fwd gate
    columns, bwd h-features feed only bwd gate columns -> one fused matmul/step."""
    z = jnp.zeros((H, H), whh_f.dtype)
    top, bot = [], []
    for k in range(4):
        top += [whh_f[:, k * H:(k + 1) * H], z]
        bot += [z, whh_b[:, k * H:(k + 1) * H]]
    return jnp.concatenate([jnp.concatenate(top, axis=1),
                            jnp.concatenate(bot, axis=1)], axis=0)


def _stack_wih_same(wih_f, wih_b, H):
    """Layer >= 1 input weights, contribution of the SAME-step fused hidden value
    h[s] = [h_f(s) | h_b(T-1-s)]:
        h_f(s)      -> fwd gate cols via W_ih_fwd[0:H]
        h_b(T-1-s)  -> bwd gate cols via W_ih_bwd[H:2H]"""
    z = jnp.zeros((H, H), wih_f.dtype)
    top, bot = [], []
    for k in range(4):
        top += [wih_f[0:H, k * H:(k + 1) * H], z]
        bot += [z, wih_b[H:2 * H, k * H:(k + 1) * H]]
    return jnp.concatenate([jnp.concatenate(top, axis=1),
                            jnp.concatenate(bot, axis=1)], axis=0)


def _stack_wih_flip(wih_f, wih_b, H):
    """Layer >= 1 input weights, contribution of the TIME-MIRRORED fused hidden
    value h[T-1-s] = [h_f(T-1-s) | h_b(s)]:
        h_f(T-1-s)  -> bwd gate cols via W_ih_bwd[0:H]
        h_b(s)      -> fwd gate cols via W_ih_fwd[H:2H]"""
    z = jnp.zeros((H, H), wih_f.dtype)
    top, bot = [], []
    for k in range(4):
        top += [z, wih_b[0:H, k * H:(k + 1) * H]]
        bot += [wih_f[H:2 * H, k * H:(k + 1) * H], z]
    return jnp.concatenate([jnp.concatenate(top, axis=1),
                            jnp.concatenate(bot, axis=1)], axis=0)


# -----------------------------------------------------------------------------
# Pallas kernel: full stacked BiLSTM + FC head in one invocation
# -----------------------------------------------------------------------------
def _fused_bilstm_fc_kernel(xproj0_ref, whh_ref, wsame_ref, wflip_ref, bmid_ref,
                            wfc_ref, bfc_ref, out_ref, *, T, N, H, num_layers):
    H2 = 2 * H
    mm_dtype = whh_ref.dtype

    def recurrence(xproj_steps, whh):
        """One fused (fwd + time-reversed bwd) LSTM layer.
        xproj_steps: list of T values (N, 8H) f32 -- input-side gate
                     pre-activations (biases folded in, i/f/o pre-scaled).
        whh:         (2H, 8H) block-diagonal recurrent weights (pre-scaled).
        Returns the list of T fused hidden states (N, 2H) f32."""
        h = jnp.zeros((N, H2), jnp.float32)
        c = jnp.zeros((N, H2), jnp.float32)
        hs = []
        for s in range(T):  # static unroll: all addresses are compile-time constants
            pre = xproj_steps[s] + jnp.dot(
                h.astype(mm_dtype), whh, preferred_element_type=jnp.float32)
            t_all = jnp.tanh(pre)                         # single EUP pass over 8H
            i_g = 0.5 * t_all[:, 0 * H2:1 * H2] + 0.5     # sigmoid = 0.5*tanh(x/2)+0.5
            f_g = 0.5 * t_all[:, 1 * H2:2 * H2] + 0.5
            g_g = t_all[:, 2 * H2:3 * H2]
            o_g = 0.5 * t_all[:, 3 * H2:4 * H2] + 0.5
            c = f_g * c + i_g * g_g
            h = o_g * jnp.tanh(c)
            hs.append(h)
        return hs

    # ---- layer 0: input projection was precomputed in the wrapper ----
    xp = [xproj0_ref[s] for s in range(T)]
    hs = recurrence(xp, whh_ref[0])

    # ---- layers 1..L-1: input projection computed in-kernel (off the chain) ----
    for l in range(1, num_layers):
        same = jnp.concatenate(hs, axis=0).astype(mm_dtype)          # (T*N, 2H)
        flip = jnp.concatenate(hs[::-1], axis=0).astype(mm_dtype)    # (T*N, 2H)
        xproj = (jnp.dot(same, wsame_ref[l - 1], preferred_element_type=jnp.float32)
                 + jnp.dot(flip, wflip_ref[l - 1], preferred_element_type=jnp.float32)
                 + bmid_ref[l - 1])                                   # (T*N, 8H)
        xp = [xproj[s * N:(s + 1) * N, :] for s in range(T)]
        hs = recurrence(xp, whh_ref[l])

    # ---- final FC on torch's out[:, -1, :] = [h_fwd(T-1), h_bwd(T-1)] ----
    # bwd lanes at kernel step 0 correspond to original time T-1.
    wfc = wfc_ref[...]                                    # (2H, O_pad) f32
    h_fwd_last = hs[T - 1][:, 0:H]
    h_bwd_last = hs[0][:, H:2 * H]
    y = (jnp.dot(h_fwd_last, wfc[0:H], preferred_element_type=jnp.float32)
         + jnp.dot(h_bwd_last, wfc[H:2 * H], preferred_element_type=jnp.float32)
         + bfc_ref[...])
    out_ref[...] = y.astype(out_ref.dtype)                # single 128-lane-dense store


def fused_bilstm_fc(xproj0, whh, wsame, wflip, bmid, wfc, bfc, *,
                    T, N, H, num_layers, out_dim):
    def full_spec(a):
        nd = a.ndim
        return pl.BlockSpec(a.shape, lambda i, _nd=nd: (0,) * _nd)

    return pl.pallas_call(
        functools.partial(_fused_bilstm_fc_kernel, T=T, N=N, H=H,
                          num_layers=num_layers),
        out_shape=jax.ShapeDtypeStruct((N, out_dim), jnp.float32),
        grid_spec=pltpu.PrefetchScalarGridSpec(
            num_scalar_prefetch=0,
            grid=(1,),  # everything (<0.3 MiB) lives in VMEM; single invocation
            in_specs=[full_spec(a) for a in
                      (xproj0, whh, wsame, wflip, bmid, wfc, bfc)],
            out_specs=pl.BlockSpec((N, out_dim), lambda i: (0, 0)),
        ),
        compiler_params=pltpu.CompilerParams(
            dimension_semantics=("arbitrary",),
        ),
    )(xproj0, whh, wsame, wflip, bmid, wfc, bfc)


# -----------------------------------------------------------------------------
# Parameters (torch.nn.LSTM / nn.Linear compatible, f32, gate order i,f,g,o)
# -----------------------------------------------------------------------------
def init_params(key, input_dim, hidden_dim, num_layers, out_steps):
    k = 1.0 / float(hidden_dim) ** 0.5
    layers = []
    for layer in range(num_layers):
        d_in = input_dim if layer == 0 else 2 * hidden_dim
        key, k1, k2, k3, k4 = jax.random.split(key, 5)
        layers.append(dict(
            w_ih=jax.random.uniform(k1, (2, d_in, 4 * hidden_dim), jnp.float32, -k, k),
            w_hh=jax.random.uniform(k2, (2, hidden_dim, 4 * hidden_dim), jnp.float32, -k, k),
            b_ih=jax.random.uniform(k3, (2, 4 * hidden_dim), jnp.float32, -k, k),
            b_hh=jax.random.uniform(k4, (2, 4 * hidden_dim), jnp.float32, -k, k),
        ))
    fc_in = 2 * hidden_dim
    fc_out = out_steps * input_dim
    kf = 1.0 / float(fc_in) ** 0.5
    key, k1, k2 = jax.random.split(key, 3)
    fc_w = jax.random.uniform(k1, (fc_in, fc_out), jnp.float32, -kf, kf)  # pre-transposed
    fc_b = jax.random.uniform(k2, (fc_out,), jnp.float32, -kf, kf)
    return {"layers": layers, "fc_w": fc_w, "fc_b": fc_b}


# -----------------------------------------------------------------------------
# Model forward (glue in plain JAX; all recurrence / deep-layer math in Pallas)
# -----------------------------------------------------------------------------
def lstm_model_forward(x, params, *, num_nodes, in_steps, out_steps,
                       input_dim, hidden_dim):
    """x: (B, in_steps, num_nodes, input_dim) -> (B, out_steps, num_nodes, input_dim)."""
    B = x.shape[0]
    H = hidden_dim
    T = in_steps
    N = B * num_nodes
    layers = params["layers"]
    L = len(layers)

    # torch: x.transpose(1, 2).view(B*num_nodes, T, D); the kernel is time-major.
    xt = jnp.transpose(x, (0, 2, 1, 3)).reshape(N, T, input_dim)
    seq = jnp.transpose(xt, (1, 0, 2)).astype(jnp.float32)        # (T, N, D)
    seq_rev = seq[::-1]                                           # bwd walks reversed time

    # ---- layer-0 input projection hoisted out of the kernel (tiny K=D matmul) ----
    l0 = layers[0]
    b0 = l0["b_ih"] + l0["b_hh"]
    proj_f = jnp.einsum("tnd,dg->tng", seq, l0["w_ih"][0],
                        preferred_element_type=jnp.float32) + b0[0]
    proj_b = jnp.einsum("tnd,dg->tng", seq_rev, l0["w_ih"][1],
                        preferred_element_type=jnp.float32) + b0[1]
    xproj0 = _gate_prescale(_interleave_gates(proj_f, proj_b, H), H)   # (T, N, 8H) f32

    # ---- fused / pre-scaled weight stacks for the kernel ----
    whh = jnp.stack([
        _gate_prescale(_stack_whh(lp["w_hh"][0], lp["w_hh"][1], H), H)
        for lp in layers
    ]).astype(MATMUL_DTYPE)                                        # (L, 2H, 8H)

    if L > 1:
        wsame = jnp.stack([
            _gate_prescale(_stack_wih_same(lp["w_ih"][0], lp["w_ih"][1], H), H)
            for lp in layers[1:]
        ]).astype(MATMUL_DTYPE)                                    # (L-1, 2H, 8H)
        wflip = jnp.stack([
            _gate_prescale(_stack_wih_flip(lp["w_ih"][0], lp["w_ih"][1], H), H)
            for lp in layers[1:]
        ]).astype(MATMUL_DTYPE)
        bmid = jnp.stack([
            _gate_prescale(_interleave_gates(lp["b_ih"][0] + lp["b_hh"][0],
                                             lp["b_ih"][1] + lp["b_hh"][1], H), H)[None]
            for lp in layers[1:]
        ])                                                         # (L-1, 1, 8H) f32
    else:  # dummies (statically unused when num_layers == 1)
        wsame = jnp.zeros((1, 2 * H, 8 * H), MATMUL_DTYPE)
        wflip = jnp.zeros((1, 2 * H, 8 * H), MATMUL_DTYPE)
        bmid = jnp.zeros((1, 1, 8 * H), jnp.float32)

    # FC head weights, zero-padded to a lane-dense output width.
    O = out_steps * input_dim
    O_pad = -(-O // 128) * 128
    wfc = jnp.zeros((2 * H, O_pad), jnp.float32).at[:, :O].set(params["fc_w"])
    bfc = jnp.zeros((1, O_pad), jnp.float32).at[:, :O].set(params["fc_b"][None, :])

    y = fused_bilstm_fc(xproj0, whh, wsame, wflip, bmid, wfc, bfc,
                        T=T, N=N, H=H, num_layers=L, out_dim=O_pad)[:, :O]   # (N, O)

    out = y.reshape(B, num_nodes, out_steps, input_dim)
    return jnp.transpose(out, (0, 2, 1, 3))                        # (B, T_out, nodes, D)


# -----------------------------------------------------------------------------
# Pure-JAX f32 reference (torch semantics) for the tolerance check
# -----------------------------------------------------------------------------
def lstm_model_reference(x, params, *, num_nodes, in_steps, out_steps,
                         input_dim, hidden_dim):
    B = x.shape[0]
    H = hidden_dim
    N = B * num_nodes
    seq = jnp.transpose(x, (0, 2, 1, 3)).reshape(N, in_steps, input_dim).astype(jnp.float32)

    def run_dir(seq_in, w_ih, w_hh, b):
        def cell(carry, x_t):
            h, c = carry
            g = x_t @ w_ih + h @ w_hh + b
            i = jax.nn.sigmoid(g[:, 0:H])
            f = jax.nn.sigmoid(g[:, H:2 * H])
            gg = jnp.tanh(g[:, 2 * H:3 * H])
            o = jax.nn.sigmoid(g[:, 3 * H:4 * H])
            c = f * c + i * gg
            h = o * jnp.tanh(c)
            return (h, c), h
        init = (jnp.zeros((N, H), jnp.float32), jnp.zeros((N, H), jnp.float32))
        _, hs = jax.lax.scan(cell, init, jnp.transpose(seq_in, (1, 0, 2)))
        return jnp.transpose(hs, (1, 0, 2))                       # (N, T, H)

    out_seq = seq
    for lp in params["layers"]:
        hf = run_dir(out_seq, lp["w_ih"][0], lp["w_hh"][0], lp["b_ih"][0] + lp["b_hh"][0])
        hb = run_dir(out_seq[:, ::-1], lp["w_ih"][1], lp["w_hh"][1],
                     lp["b_ih"][1] + lp["b_hh"][1])[:, ::-1]
        out_seq = jnp.concatenate([hf, hb], axis=-1)              # (N, T, 2H)

    y = out_seq[:, -1, :] @ params["fc_w"] + params["fc_b"]
    out = y.reshape(B, num_nodes, out_steps, input_dim)
    return jnp.transpose(out, (0, 2, 1, 3))


# -----------------------------------------------------------------------------
# Main
# -----------------------------------------------------------------------------
if __name__ == "__main__":
    batch = 2
    num_nodes = 4
    in_steps = 8
    out_steps = 3
    input_dim = 2
    hidden_dim = 32
    num_layers = 2

    key = jax.random.PRNGKey(0)
    kx, kp = jax.random.split(key)
    x = jax.random.normal(kx, (batch, in_steps, num_nodes, input_dim), jnp.float32)
    params = init_params(kp, input_dim, hidden_dim, num_layers, out_steps)

    fwd = jax.jit(functools.partial(
        lstm_model_forward,
        num_nodes=num_nodes, in_steps=in_steps, out_steps=out_steps,
        input_dim=input_dim, hidden_dim=hidden_dim))
    out = fwd(x, params)
    jax.block_until_ready(out)
    assert out.shape == (batch, out_steps, num_nodes, input_dim), out.shape

    # Explicit tolerance check vs. f32 reference (bf16 matmul operands in the
    # kernel -> not bit-exact; expected max abs error ~1e-2).
    ref = lstm_model_reference(
        x, params, num_nodes=num_nodes, in_steps=in_steps, out_steps=out_steps,
        input_dim=input_dim, hidden_dim=hidden_dim)
    err = float(jnp.max(jnp.abs(out - ref)))
    assert err < 5e-2, f"max abs error vs f32 reference too large: {err}"

    print("KERNEL_OK")
</pallas_src>

<mosaic_0001>
module attributes {stable_mosaic.version = 11 : i64} {
  func.func @_fused_bilstm_fc_kernel(%arg0: i32, %arg1: memref<8x8x256xf32, #tpu.memory_space<vmem>>, %arg2: memref<2x64x256xbf16, #tpu.memory_space<vmem>>, %arg3: memref<1x64x256xbf16, #tpu.memory_space<vmem>>, %arg4: memref<1x64x256xbf16, #tpu.memory_space<vmem>>, %arg5: memref<1x1x256xf32, #tpu.memory_space<vmem>>, %arg6: memref<64x128xf32, #tpu.memory_space<vmem>>, %arg7: memref<1x128xf32, #tpu.memory_space<vmem>>, %arg8: memref<8x128xf32, #tpu.memory_space<vmem>>) attributes {dimension_semantics = [#tpu.dimension_semantics<arbitrary>], iteration_bounds = array<i64: 1>, scalar_prefetch = 0 : i64, scratch_operands = 0 : i64, tpu.core_type = #tpu.core_type<tc>, window_params = [{pipeline_mode = #tpu.pipeline_mode<synchronous>, transform_indices = @transform_0, window_bounds = array<i64: 8, 8, 256>}, {pipeline_mode = #tpu.pipeline_mode<synchronous>, transform_indices = @transform_1, window_bounds = array<i64: 2, 64, 256>}, {pipeline_mode = #tpu.pipeline_mode<synchronous>, transform_indices = @transform_2, window_bounds = array<i64: 1, 64, 256>}, {pipeline_mode = #tpu.pipeline_mode<synchronous>, transform_indices = @transform_3, window_bounds = array<i64: 1, 64, 256>}, {pipeline_mode = #tpu.pipeline_mode<synchronous>, transform_indices = @transform_4, window_bounds = array<i64: 1, 1, 256>}, {pipeline_mode = #tpu.pipeline_mode<synchronous>, transform_indices = @transform_5, window_bounds = array<i64: 64, 128>}, {pipeline_mode = #tpu.pipeline_mode<synchronous>, transform_indices = @transform_6, window_bounds = array<i64: 1, 128>}, {pipeline_mode = #tpu.pipeline_mode<synchronous>, transform_indices = @transform_7, window_bounds = array<i64: 8, 128>}]} {
    %c0 = arith.constant 0 : index
    %c0_0 = arith.constant 0 : index
    %c0_1 = arith.constant 0 : index
    %0 = vector.load %arg1[%c0, %c0_0, %c0_1] : memref<8x8x256xf32, #tpu.memory_space<vmem>>, vector<1x8x256xf32>
    %1 = vector.shape_cast %0 : vector<1x8x256xf32> to vector<8x256xf32>
    %c1 = arith.constant 1 : index
    %c0_2 = arith.constant 0 : index
    %c0_3 = arith.constant 0 : index
    %2 = vector.load %arg1[%c1, %c0_2, %c0_3] : memref<8x8x256xf32, #tpu.memory_space<vmem>>, vector<1x8x256xf32>
    %3 = vector.shape_cast %2 : vector<1x8x256xf32> to vector<8x256xf32>
    %c2 = arith.constant 2 : index
    %c0_4 = arith.constant 0 : index
    %c0_5 = arith.constant 0 : index
    %4 = vector.load %arg1[%c2, %c0_4, %c0_5] : memref<8x8x256xf32, #tpu.memory_space<vmem>>, vector<1x8x256xf32>
    %5 = vector.shape_cast %4 : vector<1x8x256xf32> to vector<8x256xf32>
    %c3 = arith.constant 3 : index
    %c0_6 = arith.constant 0 : index
    %c0_7 = arith.constant 0 : index
    %6 = vector.load %arg1[%c3, %c0_6, %c0_7] : memref<8x8x256xf32, #tpu.memory_space<vmem>>, vector<1x8x256xf32>
    %7 = vector.shape_cast %6 : vector<1x8x256xf32> to vector<8x256xf32>
    %c4 = arith.constant 4 : index
    %c0_8 = arith.constant 0 : index
    %c0_9 = arith.constant 0 : index
    %8 = vector.load %arg1[%c4, %c0_8, %c0_9] : memref<8x8x256xf32, #tpu.memory_space<vmem>>, vector<1x8x256xf32>
    %9 = vector.shape_cast %8 : vector<1x8x256xf32> to vector<8x256xf32>
    %c5 = arith.constant 5 : index
    %c0_10 = arith.constant 0 : index
    %c0_11 = arith.constant 0 : index
    %10 = vector.load %arg1[%c5, %c0_10, %c0_11] : memref<8x8x256xf32, #tpu.memory_space<vmem>>, vector<1x8x256xf32>
    %11 = vector.shape_cast %10 : vector<1x8x256xf32> to vector<8x256xf32>
    %c6 = arith.constant 6 : index
    %c0_12 = arith.constant 0 : index
    %c0_13 = arith.constant 0 : index
    %12 = vector.load %arg1[%c6, %c0_12, %c0_13] : memref<8x8x256xf32, #tpu.memory_space<vmem>>, vector<1x8x256xf32>
    %13 = vector.shape_cast %12 : vector<1x8x256xf32> to vector<8x256xf32>
    %c7 = arith.constant 7 : index
    %c0_14 = arith.constant 0 : index
    %c0_15 = arith.constant 0 : index
    %14 = vector.load %arg1[%c7, %c0_14, %c0_15] : memref<8x8x256xf32, #tpu.memory_space<vmem>>, vector<1x8x256xf32>
    %15 = vector.shape_cast %14 : vector<1x8x256xf32> to vector<8x256xf32>
    %c0_16 = arith.constant 0 : index
    %c0_17 = arith.constant 0 : index
    %c0_18 = arith.constant 0 : index
    %16 = vector.load %arg2[%c0_16, %c0_17, %c0_18] : memref<2x64x256xbf16, #tpu.memory_space<vmem>>, vector<1x64x256xbf16>
    %17 = vector.shape_cast %16 : vector<1x64x256xbf16> to vector<64x256xbf16>
    %cst = arith.constant 0.000000e+00 : f32
    %18 = vector.broadcast %cst : f32 to vector<8x64xf32>
    %cst_19 = arith.constant 0.000000e+00 : f32
    %19 = vector.broadcast %cst_19 : f32 to vector<8x64xf32>
    %20 = arith.truncf %18 : vector<8x64xf32> to vector<8x64xbf16>
    %cst_20 = arith.constant dense<0.000000e+00> : vector<8x256xf32>
    %21 = tpu.matmul %20, %17, %cst_20 {dimension_numbers = #tpu.dot_dimension_numbers<[1], [0], [0], [1], [0, 0, 1, 1], [], []>} : vector<8x64xbf16>, vector<64x256xbf16>, vector<8x256xf32> -> vector<8x256xf32>
    %22 = arith.addf %1, %21 : vector<8x256xf32>
    %23 = math.tanh %22 : vector<8x256xf32>
    %24 = vector.extract_strided_slice %23 {offsets = [0, 0], sizes = [8, 64], strides = [1, 1]} : vector<8x256xf32> to vector<8x64xf32>
    %cst_21 = arith.constant 5.000000e-01 : f32
    %25 = vector.broadcast %cst_21 : f32 to vector<8x64xf32>
    %26 = arith.mulf %25, %24 : vector<8x64xf32>
    %cst_22 = arith.constant 5.000000e-01 : f32
    %27 = vector.broadcast %cst_22 : f32 to vector<8x64xf32>
    %28 = arith.addf %26, %27 : vector<8x64xf32>
    %29 = vector.extract_strided_slice %23 {offsets = [0, 64], sizes = [8, 64], strides = [1, 1]} : vector<8x256xf32> to vector<8x64xf32>
    %cst_23 = arith.constant 5.000000e-01 : f32
    %30 = vector.broadcast %cst_23 : f32 to vector<8x64xf32>
    %31 = arith.mulf %30, %29 : vector<8x64xf32>
    %cst_24 = arith.constant 5.000000e-01 : f32
    %32 = vector.broadcast %cst_24 : f32 to vector<8x64xf32>
    %33 = arith.addf %31, %32 : vector<8x64xf32>
    %34 = vector.extract_strided_slice %23 {offsets = [0, 128], sizes = [8, 64], strides = [1, 1]} : vector<8x256xf32> to vector<8x64xf32>
    %35 = vector.extract_strided_slice %23 {offsets = [0, 192], sizes = [8, 64], strides = [1, 1]} : vector<8x256xf32> to vector<8x64xf32>
    %cst_25 = arith.constant 5.000000e-01 : f32
    %36 = vector.broadcast %cst_25 : f32 to vector<8x64xf32>
    %37 = arith.mulf %36, %35 : vector<8x64xf32>
    %cst_26 = arith.constant 5.000000e-01 : f32
    %38 = vector.broadcast %cst_26 : f32 to vector<8x64xf32>
    %39 = arith.addf %37, %38 : vector<8x64xf32>
    %40 = arith.mulf %33, %19 : vector<8x64xf32>
    %41 = arith.mulf %28, %34 : vector<8x64xf32>
    %42 = arith.addf %40, %41 : vector<8x64xf32>
    %43 = math.tanh %42 : vector<8x64xf32>
    %44 = arith.mulf %39, %43 : vector<8x64xf32>
    %45 = arith.truncf %44 : vector<8x64xf32> to vector<8x64xbf16>
    %cst_27 = arith.constant dense<0.000000e+00> : vector<8x256xf32>
    %46 = tpu.matmul %45, %17, %cst_27 {dimension_numbers = #tpu.dot_dimension_numbers<[1], [0], [0], [1], [0, 0, 1, 1], [], []>} : vector<8x64xbf16>, vector<64x256xbf16>, vector<8x256xf32> -> vector<8x256xf32>
    %47 = arith.addf %3, %46 : vector<8x256xf32>
    %48 = math.tanh %47 : vector<8x256xf32>
    %49 = vector.extract_strided_slice %48 {offsets = [0, 0], sizes = [8, 64], strides = [1, 1]} : vector<8x256xf32> to vector<8x64xf32>
    %cst_28 = arith.constant 5.000000e-01 : f32
    %50 = vector.broadcast %cst_28 : f32 to vector<8x64xf32>
    %51 = arith.mulf %50, %49 : vector<8x64xf32>
    %cst_29 = arith.constant 5.000000e-01 : f32
    %52 = vector.broadcast %cst_29 : f32 to vector<8x64xf32>
    %53 = arith.addf %51, %52 : vector<8x64xf32>
    %54 = vector.extract_strided_slice %48 {offsets = [0, 64], sizes = [8, 64], strides = [1, 1]} : vector<8x256xf32> to vector<8x64xf32>
    %cst_30 = arith.constant 5.000000e-01 : f32
    %55 = vector.broadcast %cst_30 : f32 to vector<8x64xf32>
    %56 = arith.mulf %55, %54 : vector<8x64xf32>
    %cst_31 = arith.constant 5.000000e-01 : f32
    %57 = vector.broadcast %cst_31 : f32 to vector<8x64xf32>
    %58 = arith.addf %56, %57 : vector<8x64xf32>
    %59 = vector.extract_strided_slice %48 {offsets = [0, 128], sizes = [8, 64], strides = [1, 1]} : vector<8x256xf32> to vector<8x64xf32>
    %60 = vector.extract_strided_slice %48 {offsets = [0, 192], sizes = [8, 64], strides = [1, 1]} : vector<8x256xf32> to vector<8x64xf32>
    %cst_32 = arith.constant 5.000000e-01 : f32
    %61 = vector.broadcast %cst_32 : f32 to vector<8x64xf32>
    %62 = arith.mulf %61, %60 : vector<8x64xf32>
    %cst_33 = arith.constant 5.000000e-01 : f32
    %63 = vector.broadcast %cst_33 : f32 to vector<8x64xf32>
    %64 = arith.addf %62, %63 : vector<8x64xf32>
    %65 = arith.mulf %58, %42 : vector<8x64xf32>
    %66 = arith.mulf %53, %59 : vector<8x64xf32>
    %67 = arith.addf %65, %66 : vector<8x64xf32>
    %68 = math.tanh %67 : vector<8x64xf32>
    %69 = arith.mulf %64, %68 : vector<8x64xf32>
    %70 = arith.truncf %69 : vector<8x64xf32> to vector<8x64xbf16>
    %cst_34 = arith.constant dense<0.000000e+00> : vector<8x256xf32>
    %71 = tpu.matmul %70, %17, %cst_34 {dimension_numbers = #tpu.dot_dimension_numbers<[1], [0], [0], [1], [0, 0, 1, 1], [], []>} : vector<8x64xbf16>, vector<64x256xbf16>, vector<8x256xf32> -> vector<8x256xf32>
    %72 = arith.addf %5, %71 : vector<8x256xf32>
    %73 = math.tanh %72 : vector<8x256xf32>
    %74 = vector.extract_strided_slice %73 {offsets = [0, 0], sizes = [8, 64], strides = [1, 1]} : vector<8x256xf32> to vector<8x64xf32>
    %cst_35 = arith.constant 5.000000e-01 : f32
    %75 = vector.broadcast %cst_35 : f32 to vector<8x64xf32>
    %76 = arith.mulf %75, %74 : vector<8x64xf32>
    %cst_36 = arith.constant 5.000000e-01 : f32
    %77 = vector.broadcast %cst_36 : f32 to vector<8x64xf32>
    %78 = arith.addf %76, %77 : vector<8x64xf32>
    %79 = vector.extract_strided_slice %73 {offsets = [0, 64], sizes = [8, 64], strides = [1, 1]} : vector<8x256xf32> to vector<8x64xf32>
    %cst_37 = arith.constant 5.000000e-01 : f32
    %80 = vector.broadcast %cst_37 : f32 to vector<8x64xf32>
    %81 = arith.mulf %80, %79 : vector<8x64xf32>
    %cst_38 = arith.constant 5.000000e-01 : f32
    %82 = vector.broadcast %cst_38 : f32 to vector<8x64xf32>
    %83 = arith.addf %81, %82 : vector<8x64xf32>
    %84 = vector.extract_strided_slice %73 {offsets = [0, 128], sizes = [8, 64], strides = [1, 1]} : vector<8x256xf32> to vector<8x64xf32>
    %85 = vector.extract_strided_slice %73 {offsets = [0, 192], sizes = [8, 64], strides = [1, 1]} : vector<8x256xf32> to vector<8x64xf32>
    %cst_39 = arith.constant 5.000000e-01 : f32
    %86 = vector.broadcast %cst_39 : f32 to vector<8x64xf32>
    %87 = arith.mulf %86, %85 : vector<8x64xf32>
    %cst_40 = arith.constant 5.000000e-01 : f32
    %88 = vector.broadcast %cst_40 : f32 to vector<8x64xf32>
    %89 = arith.addf %87, %88 : vector<8x64xf32>
    %90 = arith.mulf %83, %67 : vector<8x64xf32>
    %91 = arith.mulf %78, %84 : vector<8x64xf32>
    %92 = arith.addf %90, %91 : vector<8x64xf32>
    %93 = math.tanh %92 : vector<8x64xf32>
    %94 = arith.mulf %89, %93 : vector<8x64xf32>
    %95 = arith.truncf %94 : vector<8x64xf32> to vector<8x64xbf16>
    %cst_41 = arith.constant dense<0.000000e+00> : vector<8x256xf32>
    %96 = tpu.matmul %95, %17, %cst_41 {dimension_numbers = #tpu.dot_dimension_numbers<[1], [0], [0], [1], [0, 0, 1, 1], [], []>} : vector<8x64xbf16>, vector<64x256xbf16>, vector<8x256xf32> -> vector<8x256xf32>
    %97 = arith.addf %7, %96 : vector<8x256xf32>
    %98 = math.tanh %97 : vector<8x256xf32>
    %99 = vector.extract_strided_slice %98 {offsets = [0, 0], sizes = [8, 64], strides = [1, 1]} : vector<8x256xf32> to vector<8x64xf32>
    %cst_42 = arith.constant 5.000000e-01 : f32
    %100 = vector.broadcast %cst_42 : f32 to vector<8x64xf32>
    %101 = arith.mulf %100, %99 : vector<8x64xf32>
    %cst_43 = arith.constant 5.000000e-01 : f32
    %102 = vector.broadcast %cst_43 : f32 to vector<8x64xf32>
    %103 = arith.addf %101, %102 : vector<8x64xf32>
    %104 = vector.extract_strided_slice %98 {offsets = [0, 64], sizes = [8, 64], strides = [1, 1]} : vector<8x256xf32> to vector<8x64xf32>
    %cst_44 = arith.constant 5.000000e-01 : f32
    %105 = vector.broadcast %cst_44 : f32 to vector<8x64xf32>
    %106 = arith.mulf %105, %104 : vector<8x64xf32>
    %cst_45 = arith.constant 5.000000e-01 : f32
    %107 = vector.broadcast %cst_45 : f32 to vector<8x64xf32>
    %108 = arith.addf %106, %107 : vector<8x64xf32>
    %109 = vector.extract_strided_slice %98 {offsets = [0, 128], sizes = [8, 64], strides = [1, 1]} : vector<8x256xf32> to vector<8x64xf32>
    %110 = vector.extract_strided_slice %98 {offsets = [0, 192], sizes = [8, 64], strides = [1, 1]} : vector<8x256xf32> to vector<8x64xf32>
    %cst_46 = arith.constant 5.000000e-01 : f32
    %111 = vector.broadcast %cst_46 : f32 to vector<8x64xf32>
    %112 = arith.mulf %111, %110 : vector<8x64xf32>
    %cst_47 = arith.constant 5.000000e-01 : f32
    %113 = vector.broadcast %cst_47 : f32 to vector<8x64xf32>
    %114 = arith.addf %112, %113 : vector<8x64xf32>
    %115 = arith.mulf %108, %92 : vector<8x64xf32>
    %116 = arith.mulf %103, %109 : vector<8x64xf32>
    %117 = arith.addf %115, %116 : vector<8x64xf32>
    %118 = math.tanh %117 : vector<8x64xf32>
    %119 = arith.mulf %114, %118 : vector<8x64xf32>
    %120 = arith.truncf %119 : vector<8x64xf32> to vector<8x64xbf16>
    %cst_48 = arith.constant dense<0.000000e+00> : vector<8x256xf32>
    %121 = tpu.matmul %120, %17, %cst_48 {dimension_numbers = #tpu.dot_dimension_numbers<[1], [0], [0], [1], [0, 0, 1, 1], [], []>} : vector<8x64xbf16>, vector<64x256xbf16>, vector<8x256xf32> -> vector<8x256xf32>
    %122 = arith.addf %9, %121 : vector<8x256xf32>
    %123 = math.tanh %122 : vector<8x256xf32>
    %124 = vector.extract_strided_slice %123 {offsets = [0, 0], sizes = [8, 64], strides = [1, 1]} : vector<8x256xf32> to vector<8x64xf32>
    %cst_49 = arith.constant 5.000000e-01 : f32
    %125 = vector.broadcast %cst_49 : f32 to vector<8x64xf32>
    %126 = arith.mulf %125, %124 : vector<8x64xf32>
    %cst_50 = arith.constant 5.000000e-01 : f32
    %127 = vector.broadcast %cst_50 : f32 to vector<8x64xf32>
    %128 = arith.addf %126, %127 : vector<8x64xf32>
    %129 = vector.extract_strided_slice %123 {offsets = [0, 64], sizes = [8, 64], strides = [1, 1]} : vector<8x256xf32> to vector<8x64xf32>
    %cst_51 = arith.constant 5.000000e-01 : f32
    %130 = vector.broadcast %cst_51 : f32 to vector<8x64xf32>
    %131 = arith.mulf %130, %129 : vector<8x64xf32>
    %cst_52 = arith.constant 5.000000e-01 : f32
    %132 = vector.broadcast %cst_52 : f32 to vector<8x64xf32>
    %133 = arith.addf %131, %132 : vector<8x64xf32>
    %134 = vector.extract_strided_slice %123 {offsets = [0, 128], sizes = [8, 64], strides = [1, 1]} : vector<8x256xf32> to vector<8x64xf32>
    %135 = vector.extract_strided_slice %123 {offsets = [0, 192], sizes = [8, 64], strides = [1, 1]} : vector<8x256xf32> to vector<8x64xf32>
    %cst_53 = arith.constant 5.000000e-01 : f32
    %136 = vector.broadcast %cst_53 : f32 to vector<8x64xf32>
    %137 = arith.mulf %136, %135 : vector<8x64xf32>
    %cst_54 = arith.constant 5.000000e-01 : f32
    %138 = vector.broadcast %cst_54 : f32 to vector<8x64xf32>
    %139 = arith.addf %137, %138 : vector<8x64xf32>
    %140 = arith.mulf %133, %117 : vector<8x64xf32>
    %141 = arith.mulf %128, %134 : vector<8x64xf32>
    %142 = arith.addf %140, %141 : vector<8x64xf32>
    %143 = math.tanh %142 : vector<8x64xf32>
    %144 = arith.mulf %139, %143 : vector<8x64xf32>
    %145 = arith.truncf %144 : vector<8x64xf32> to vector<8x64xbf16>
    %cst_55 = arith.constant dense<0.000000e+00> : vector<8x256xf32>
    %146 = tpu.matmul %145, %17, %cst_55 {dimension_numbers = #tpu.dot_dimension_numbers<[1], [0], [0], [1], [0, 0, 1, 1], [], []>} : vector<8x64xbf16>, vector<64x256xbf16>, vector<8x256xf32> -> vector<8x256xf32>
    %147 = arith.addf %11, %146 : vector<8x256xf32>
    %148 = math.tanh %147 : vector<8x256xf32>
    %149 = vector.extract_strided_slice %148 {offsets = [0, 0], sizes = [8, 64], strides = [1, 1]} : vector<8x256xf32> to vector<8x64xf32>
    %cst_56 = arith.constant 5.000000e-01 : f32
    %150 = vector.broadcast %cst_56 : f32 to vector<8x64xf32>
    %151 = arith.mulf %150, %149 : vector<8x64xf32>
    %cst_57 = arith.constant 5.000000e-01 : f32
    %152 = vector.broadcast %cst_57 : f32 to vector<8x64xf32>
    %153 = arith.addf %151, %152 : vector<8x64xf32>
    %154 = vector.extract_strided_slice %148 {offsets = [0, 64], sizes = [8, 64], strides = [1, 1]} : vector<8x256xf32> to vector<8x64xf32>
    %cst_58 = arith.constant 5.000000e-01 : f32
    %155 = vector.broadcast %cst_58 : f32 to vector<8x64xf32>
    %156 = arith.mulf %155, %154 : vector<8x64xf32>
    %cst_59 = arith.constant 5.000000e-01 : f32
    %157 = vector.broadcast %cst_59 : f32 to vector<8x64xf32>
    %158 = arith.addf %156, %157 : vector<8x64xf32>
    %159 = vector.extract_strided_slice %148 {offsets = [0, 128], sizes = [8, 64], strides = [1, 1]} : vector<8x256xf32> to vector<8x64xf32>
    %160 = vector.extract_strided_slice %148 {offsets = [0, 192], sizes = [8, 64], strides = [1, 1]} : vector<8x256xf32> to vector<8x64xf32>
    %cst_60 = arith.constant 5.000000e-01 : f32
    %161 = vector.broadcast %cst_60 : f32 to vector<8x64xf32>
    %162 = arith.mulf %161, %160 : vector<8x64xf32>
    %cst_61 = arith.constant 5.000000e-01 : f32
    %163 = vector.broadcast %cst_61 : f32 to vector<8x64xf32>
    %164 = arith.addf %162, %163 : vector<8x64xf32>
    %165 = arith.mulf %158, %142 : vector<8x64xf32>
    %166 = arith.mulf %153, %159 : vector<8x64xf32>
    %167 = arith.addf %165, %166 : vector<8x64xf32>
    %168 = math.tanh %167 : vector<8x64xf32>
    %169 = arith.mulf %164, %168 : vector<8x64xf32>
    %170 = arith.truncf %169 : vector<8x64xf32> to vector<8x64xbf16>
    %cst_62 = arith.constant dense<0.000000e+00> : vector<8x256xf32>
    %171 = tpu.matmul %170, %17, %cst_62 {dimension_numbers = #tpu.dot_dimension_numbers<[1], [0], [0], [1], [0, 0, 1, 1], [], []>} : vector<8x64xbf16>, vector<64x256xbf16>, vector<8x256xf32> -> vector<8x256xf32>
    %172 = arith.addf %13, %171 : vector<8x256xf32>
    %173 = math.tanh %172 : vector<8x256xf32>
    %174 = vector.extract_strided_slice %173 {offsets = [0, 0], sizes = [8, 64], strides = [1, 1]} : vector<8x256xf32> to vector<8x64xf32>
    %cst_63 = arith.constant 5.000000e-01 : f32
    %175 = vector.broadcast %cst_63 : f32 to vector<8x64xf32>
    %176 = arith.mulf %175, %174 : vector<8x64xf32>
    %cst_64 = arith.constant 5.000000e-01 : f32
    %177 = vector.broadcast %cst_64 : f32 to vector<8x64xf32>
    %178 = arith.addf %176, %177 : vector<8x64xf32>
    %179 = vector.extract_strided_slice %173 {offsets = [0, 64], sizes = [8, 64], strides = [1, 1]} : vector<8x256xf32> to vector<8x64xf32>
    %cst_65 = arith.constant 5.000000e-01 : f32
    %180 = vector.broadcast %cst_65 : f32 to vector<8x64xf32>
    %181 = arith.mulf %180, %179 : vector<8x64xf32>
    %cst_66 = arith.constant 5.000000e-01 : f32
    %182 = vector.broadcast %cst_66 : f32 to vector<8x64xf32>
    %183 = arith.addf %181, %182 : vector<8x64xf32>
    %184 = vector.extract_strided_slice %173 {offsets = [0, 128], sizes = [8, 64], strides = [1, 1]} : vector<8x256xf32> to vector<8x64xf32>
    %185 = vector.extract_strided_slice %173 {offsets = [0, 192], sizes = [8, 64], strides = [1, 1]} : vector<8x256xf32> to vector<8x64xf32>
    %cst_67 = arith.constant 5.000000e-01 : f32
    %186 = vector.broadcast %cst_67 : f32 to vector<8x64xf32>
    %187 = arith.mulf %186, %185 : vector<8x64xf32>
    %cst_68 = arith.constant 5.000000e-01 : f32
    %188 = vector.broadcast %cst_68 : f32 to vector<8x64xf32>
    %189 = arith.addf %187, %188 : vector<8x64xf32>
    %190 = arith.mulf %183, %167 : vector<8x64xf32>
    %191 = arith.mulf %178, %184 : vector<8x64xf32>
    %192 = arith.addf %190, %191 : vector<8x64xf32>
    %193 = math.tanh %192 : vector<8x64xf32>
    %194 = arith.mulf %189, %193 : vector<8x64xf32>
    %195 = arith.truncf %194 : vector<8x64xf32> to vector<8x64xbf16>
    %cst_69 = arith.constant dense<0.000000e+00> : vector<8x256xf32>
    %196 = tpu.matmul %195, %17, %cst_69 {dimension_numbers = #tpu.dot_dimension_numbers<[1], [0], [0], [1], [0, 0, 1, 1], [], []>} : vector<8x64xbf16>, vector<64x256xbf16>, vector<8x256xf32> -> vector<8x256xf32>
    %197 = arith.addf %15, %196 : vector<8x256xf32>
    %198 = math.tanh %197 : vector<8x256xf32>
    %199 = vector.extract_strided_slice %198 {offsets = [0, 0], sizes = [8, 64], strides = [1, 1]} : vector<8x256xf32> to vector<8x64xf32>
    %cst_70 = arith.constant 5.000000e-01 : f32
    %200 = vector.broadcast %cst_70 : f32 to vector<8x64xf32>
    %201 = arith.mulf %200, %199 : vector<8x64xf32>
    %cst_71 = arith.constant 5.000000e-01 : f32
    %202 = vector.broadcast %cst_71 : f32 to vector<8x64xf32>
    %203 = arith.addf %201, %202 : vector<8x64xf32>
    %204 = vector.extract_strided_slice %198 {offsets = [0, 64], sizes = [8, 64], strides = [1, 1]} : vector<8x256xf32> to vector<8x64xf32>
    %cst_72 = arith.constant 5.000000e-01 : f32
    %205 = vector.broadcast %cst_72 : f32 to vector<8x64xf32>
    %206 = arith.mulf %205, %204 : vector<8x64xf32>
    %cst_73 = arith.constant 5.000000e-01 : f32
    %207 = vector.broadcast %cst_73 : f32 to vector<8x64xf32>
    %208 = arith.addf %206, %207 : vector<8x64xf32>
    %209 = vector.extract_strided_slice %198 {offsets = [0, 128], sizes = [8, 64], strides = [1, 1]} : vector<8x256xf32> to vector<8x64xf32>
    %210 = vector.extract_strided_slice %198 {offsets = [0, 192], sizes = [8, 64], strides = [1, 1]} : vector<8x256xf32> to vector<8x64xf32>
    %cst_74 = arith.constant 5.000000e-01 : f32
    %211 = vector.broadcast %cst_74 : f32 to vector<8x64xf32>
    %212 = arith.mulf %211, %210 : vector<8x64xf32>
    %cst_75 = arith.constant 5.000000e-01 : f32
    %213 = vector.broadcast %cst_75 : f32 to vector<8x64xf32>
    %214 = arith.addf %212, %213 : vector<8x64xf32>
    %215 = arith.mulf %208, %192 : vector<8x64xf32>
    %216 = arith.mulf %203, %209 : vector<8x64xf32>
    %217 = arith.addf %215, %216 : vector<8x64xf32>
    %218 = math.tanh %217 : vector<8x64xf32>
    %219 = arith.mulf %214, %218 : vector<8x64xf32>
    %220 = tpu.concatenate %44, %69, %94, %119, %144, %169, %194, %219 in 0 : vector<8x64xf32>, vector<8x64xf32>, vector<8x64xf32>, vector<8x64xf32>, vector<8x64xf32>, vector<8x64xf32>, vector<8x64xf32>, vector<8x64xf32> -> vector<64x64xf32>
    %221 = arith.truncf %220 : vector<64x64xf32> to vector<64x64xbf16>
    %222 = tpu.concatenate %219, %194, %169, %144, %119, %94, %69, %44 in 0 : vector<8x64xf32>, vector<8x64xf32>, vector<8x64xf32>, vector<8x64xf32>, vector<8x64xf32>, vector<8x64xf32>, vector<8x64xf32>, vector<8x64xf32> -> vector<64x64xf32>
    %223 = arith.truncf %222 : vector<64x64xf32> to vector<64x64xbf16>
    %c0_76 = arith.constant 0 : index
    %c0_77 = arith.constant 0 : index
    %c0_78 = arith.constant 0 : index
    %224 = vector.load %arg3[%c0_76, %c0_77, %c0_78] : memref<1x64x256xbf16, #tpu.memory_space<vmem>>, vector<1x64x256xbf16>
    %225 = vector.shape_cast %224 : vector<1x64x256xbf16> to vector<64x256xbf16>
    %cst_79 = arith.constant dense<0.000000e+00> : vector<64x256xf32>
    %226 = tpu.matmul %221, %225, %cst_79 {dimension_numbers = #tpu.dot_dimension_numbers<[1], [0], [0], [1], [0, 0, 1, 1], [], []>} : vector<64x64xbf16>, vector<64x256xbf16>, vector<64x256xf32> -> vector<64x256xf32>
    %c0_80 = arith.constant 0 : index
    %c0_81 = arith.constant 0 : index
    %c0_82 = arith.constant 0 : index
    %227 = vector.load %arg4[%c0_80, %c0_81, %c0_82] : memref<1x64x256xbf16, #tpu.memory_space<vmem>>, vector<1x64x256xbf16>
    %228 = vector.shape_cast %227 : vector<1x64x256xbf16> to vector<64x256xbf16>
    %cst_83 = arith.constant dense<0.000000e+00> : vector<64x256xf32>
    %229 = tpu.matmul %223, %228, %cst_83 {dimension_numbers = #tpu.dot_dimension_numbers<[1], [0], [0], [1], [0, 0, 1, 1], [], []>} : vector<64x64xbf16>, vector<64x256xbf16>, vector<64x256xf32> -> vector<64x256xf32>
    %230 = arith.addf %226, %229 : vector<64x256xf32>
    %c0_84 = arith.constant 0 : index
    %c0_85 = arith.constant 0 : index
    %c0_86 = arith.constant 0 : index
    %231 = vector.load %arg5[%c0_84, %c0_85, %c0_86] : memref<1x1x256xf32, #tpu.memory_space<vmem>>, vector<1x1x256xf32>
    %232 = vector.shape_cast %231 : vector<1x1x256xf32> to vector<1x256xf32>
    %233 = vector.broadcast %232 : vector<1x256xf32> to vector<64x256xf32>
    %234 = arith.addf %230, %233 : vector<64x256xf32>
    %235 = vector.extract_strided_slice %234 {offsets = [0, 0], sizes = [8, 256], strides = [1, 1]} : vector<64x256xf32> to vector<8x256xf32>
    %236 = vector.extract_strided_slice %234 {offsets = [8, 0], sizes = [8, 256], strides = [1, 1]} : vector<64x256xf32> to vector<8x256xf32>
    %237 = vector.extract_strided_slice %234 {offsets = [16, 0], sizes = [8, 256], strides = [1, 1]} : vector<64x256xf32> to vector<8x256xf32>
    %238 = vector.extract_strided_slice %234 {offsets = [24, 0], sizes = [8, 256], strides = [1, 1]} : vector<64x256xf32> to vector<8x256xf32>
    %239 = vector.extract_strided_slice %234 {offsets = [32, 0], sizes = [8, 256], strides = [1, 1]} : vector<64x256xf32> to vector<8x256xf32>
    %240 = vector.extract_strided_slice %234 {offsets = [40, 0], sizes = [8, 256], strides = [1, 1]} : vector<64x256xf32> to vector<8x256xf32>
    %241 = vector.extract_strided_slice %234 {offsets = [48, 0], sizes = [8, 256], strides = [1, 1]} : vector<64x256xf32> to vector<8x256xf32>
    %242 = vector.extract_strided_slice %234 {offsets = [56, 0], sizes = [8, 256], strides = [1, 1]} : vector<64x256xf32> to vector<8x256xf32>
    %c1_87 = arith.constant 1 : index
    %c0_88 = arith.constant 0 : index
    %c0_89 = arith.constant 0 : index
    %243 = vector.load %arg2[%c1_87, %c0_88, %c0_89] : memref<2x64x256xbf16, #tpu.memory_space<vmem>>, vector<1x64x256xbf16>
    %244 = vector.shape_cast %243 : vector<1x64x256xbf16> to vector<64x256xbf16>
    %cst_90 = arith.constant 0.000000e+00 : f32
    %245 = vector.broadcast %cst_90 : f32 to vector<8x64xf32>
    %cst_91 = arith.constant 0.000000e+00 : f32
    %246 = vector.broadcast %cst_91 : f32 to vector<8x64xf32>
    %247 = arith.truncf %245 : vector<8x64xf32> to vector<8x64xbf16>
    %cst_92 = arith.constant dense<0.000000e+00> : vector<8x256xf32>
    %248 = tpu.matmul %247, %244, %cst_92 {dimension_numbers = #tpu.dot_dimension_numbers<[1], [0], [0], [1], [0, 0, 1, 1], [], []>} : vector<8x64xbf16>, vector<64x256xbf16>, vector<8x256xf32> -> vector<8x256xf32>
    %249 = arith.addf %235, %248 : vector<8x256xf32>
    %250 = math.tanh %249 : vector<8x256xf32>
    %251 = vector.extract_strided_slice %250 {offsets = [0, 0], sizes = [8, 64], strides = [1, 1]} : vector<8x256xf32> to vector<8x64xf32>
    %cst_93 = arith.constant 5.000000e-01 : f32
    %252 = vector.broadcast %cst_93 : f32 to vector<8x64xf32>
    %253 = arith.mulf %252, %251 : vector<8x64xf32>
    %cst_94 = arith.constant 5.000000e-01 : f32
    %254 = vector.broadcast %cst_94 : f32 to vector<8x64xf32>
    %255 = arith.addf %253, %254 : vector<8x64xf32>
    %256 = vector.extract_strided_slice %250 {offsets = [0, 64], sizes = [8, 64], strides = [1, 1]} : vector<8x256xf32> to vector<8x64xf32>
    %cst_95 = arith.constant 5.000000e-01 : f32
    %257 = vector.broadcast %cst_95 : f32 to vector<8x64xf32>
    %258 = arith.mulf %257, %256 : vector<8x64xf32>
    %cst_96 = arith.constant 5.000000e-01 : f32
    %259 = vector.broadcast %cst_96 : f32 to vector<8x64xf32>
    %260 = arith.addf %258, %259 : vector<8x64xf32>
    %261 = vector.extract_strided_slice %250 {offsets = [0, 128], sizes = [8, 64], strides = [1, 1]} : vector<8x256xf32> to vector<8x64xf32>
    %262 = vector.extract_strided_slice %250 {offsets = [0, 192], sizes = [8, 64], strides = [1, 1]} : vector<8x256xf32> to vector<8x64xf32>
    %cst_97 = arith.constant 5.000000e-01 : f32
    %263 = vector.broadcast %cst_97 : f32 to vector<8x64xf32>
    %264 = arith.mulf %263, %262 : vector<8x64xf32>
    %cst_98 = arith.constant 5.000000e-01 : f32
    %265 = vector.broadcast %cst_98 : f32 to vector<8x64xf32>
    %266 = arith.addf %264, %265 : vector<8x64xf32>
    %267 = arith.mulf %260, %246 : vector<8x64xf32>
    %268 = arith.mulf %255, %261 : vector<8x64xf32>
    %269 = arith.addf %267, %268 : vector<8x64xf32>
    %270 = math.tanh %269 : vector<8x64xf32>
    %271 = arith.mulf %266, %270 : vector<8x64xf32>
    %272 = arith.truncf %271 : vector<8x64xf32> to vector<8x64xbf16>
    %cst_99 = arith.constant dense<0.000000e+00> : vector<8x256xf32>
    %273 = tpu.matmul %272, %244, %cst_99 {dimension_numbers = #tpu.dot_dimension_numbers<[1], [0], [0], [1], [0, 0, 1, 1], [], []>} : vector<8x64xbf16>, vector<64x256xbf16>, vector<8x256xf32> -> vector<8x256xf32>
    %274 = arith.addf %236, %273 : vector<8x256xf32>
    %275 = math.tanh %274 : vector<8x256xf32>
    %276 = vector.extract_strided_slice %275 {offsets = [0, 0], sizes = [8, 64], strides = [1, 1]} : vector<8x256xf32> to vector<8x64xf32>
    %cst_100 = arith.constant 5.000000e-01 : f32
    %277 = vector.broadcast %cst_100 : f32 to vector<8x64xf32>
    %278 = arith.mulf %277, %276 : vector<8x64xf32>
    %cst_101 = arith.constant 5.000000e-01 : f32
    %279 = vector.broadcast %cst_101 : f32 to vector<8x64xf32>
    %280 = arith.addf %278, %279 : vector<8x64xf32>
    %281 = vector.extract_strided_slice %275 {offsets = [0, 64], sizes = [8, 64], strides = [1, 1]} : vector<8x256xf32> to vector<8x64xf32>
    %cst_102 = arith.constant 5.000000e-01 : f32
    %282 = vector.broadcast %cst_102 : f32 to vector<8x64xf32>
    %283 = arith.mulf %282, %281 : vector<8x64xf32>
    %cst_103 = arith.constant 5.000000e-01 : f32
    %284 = vector.broadcast %cst_103 : f32 to vector<8x64xf32>
    %285 = arith.addf %283, %284 : vector<8x64xf32>
    %286 = vector.extract_strided_slice %275 {offsets = [0, 128], sizes = [8, 64], strides = [1, 1]} : vector<8x256xf32> to vector<8x64xf32>
    %287 = vector.extract_strided_slice %275 {offsets = [0, 192], sizes = [8, 64], strides = [1, 1]} : vector<8x256xf32> to vector<8x64xf32>
    %cst_104 = arith.constant 5.000000e-01 : f32
    %288 = vector.broadcast %cst_104 : f32 to vector<8x64xf32>
    %289 = arith.mulf %288, %287 : vector<8x64xf32>
    %cst_105 = arith.constant 5.000000e-01 : f32
    %290 = vector.broadcast %cst_105 : f32 to vector<8x64xf32>
    %291 = arith.addf %289, %290 : vector<8x64xf32>
    %292 = arith.mulf %285, %269 : vector<8x64xf32>
    %293 = arith.mulf %280, %286 : vector<8x64xf32>
    %294 = arith.addf %292, %293 : vector<8x64xf32>
    %295 = math.tanh %294 : vector<8x64xf32>
    %296 = arith.mulf %291, %295 : vector<8x64xf32>
    %297 = arith.truncf %296 : vector<8x64xf32> to vector<8x64xbf16>
    %cst_106 = arith.constant dense<0.000000e+00> : vector<8x256xf32>
    %298 = tpu.matmul %297, %244, %cst_106 {dimension_numbers = #tpu.dot_dimension_numbers<[1], [0], [0], [1], [0, 0, 1, 1], [], []>} : vector<8x64xbf16>, vector<64x256xbf16>, vector<8x256xf32> -> vector<8x256xf32>
    %299 = arith.addf %237, %298 : vector<8x256xf32>
    %300 = math.tanh %299 : vector<8x256xf32>
    %301 = vector.extract_strided_slice %300 {offsets = [0, 0], sizes = [8, 64], strides = [1, 1]} : vector<8x256xf32> to vector<8x64xf32>
    %cst_107 = arith.constant 5.000000e-01 : f32
    %302 = vector.broadcast %cst_107 : f32 to vector<8x64xf32>
    %303 = arith.mulf %302, %301 : vector<8x64xf32>
    %cst_108 = arith.constant 5.000000e-01 : f32
    %304 = vector.broadcast %cst_108 : f32 to vector<8x64xf32>
    %305 = arith.addf %303, %304 : vector<8x64xf32>
    %306 = vector.extract_strided_slice %300 {offsets = [0, 64], sizes = [8, 64], strides = [1, 1]} : vector<8x256xf32> to vector<8x64xf32>
    %cst_109 = arith.constant 5.000000e-01 : f32
    %307 = vector.broadcast %cst_109 : f32 to vector<8x64xf32>
    %308 = arith.mulf %307, %306 : vector<8x64xf32>
    %cst_110 = arith.constant 5.000000e-01 : f32
    %309 = vector.broadcast %cst_110 : f32 to vector<8x64xf32>
    %310 = arith.addf %308, %309 : vector<8x64xf32>
    %311 = vector.extract_strided_slice %300 {offsets = [0, 128], sizes = [8, 64], strides = [1, 1]} : vector<8x256xf32> to vector<8x64xf32>
    %312 = vector.extract_strided_slice %300 {offsets = [0, 192], sizes = [8, 64], strides = [1, 1]} : vector<8x256xf32> to vector<8x64xf32>
    %cst_111 = arith.constant 5.000000e-01 : f32
    %313 = vector.broadcast %cst_111 : f32 to vector<8x64xf32>
    %314 = arith.mulf %313, %312 : vector<8x64xf32>
    %cst_112 = arith.constant 5.000000e-01 : f32
    %315 = vector.broadcast %cst_112 : f32 to vector<8x64xf32>
    %316 = arith.addf %314, %315 : vector<8x64xf32>
    %317 = arith.mulf %310, %294 : vector<8x64xf32>
    %318 = arith.mulf %305, %311 : vector<8x64xf32>
    %319 = arith.addf %317, %318 : vector<8x64xf32>
    %320 = math.tanh %319 : vector<8x64xf32>
    %321 = arith.mulf %316, %320 : vector<8x64xf32>
    %322 = arith.truncf %321 : vector<8x64xf32> to vector<8x64xbf16>
    %cst_113 = arith.constant dense<0.000000e+00> : vector<8x256xf32>
    %323 = tpu.matmul %322, %244, %cst_113 {dimension_numbers = #tpu.dot_dimension_numbers<[1], [0], [0], [1], [0, 0, 1, 1], [], []>} : vector<8x64xbf16>, vector<64x256xbf16>, vector<8x256xf32> -> vector<8x256xf32>
    %324 = arith.addf %238, %323 : vector<8x256xf32>
    %325 = math.tanh %324 : vector<8x256xf32>
    %326 = vector.extract_strided_slice %325 {offsets = [0, 0], sizes = [8, 64], strides = [1, 1]} : vector<8x256xf32> to vector<8x64xf32>
    %cst_114 = arith.constant 5.000000e-01 : f32
    %327 = vector.broadcast %cst_114 : f32 to vector<8x64xf32>
    %328 = arith.mulf %327, %326 : vector<8x64xf32>
    %cst_115 = arith.constant 5.000000e-01 : f32
    %329 = vector.broadcast %cst_115 : f32 to vector<8x64xf32>
    %330 = arith.addf %328, %329 : vector<8x64xf32>
    %331 = vector.extract_strided_slice %325 {offsets = [0, 64], sizes = [8, 64], strides = [1, 1]} : vector<8x256xf32> to vector<8x64xf32>
    %cst_116 = arith.constant 5.000000e-01 : f32
    %332 = vector.broadcast %cst_116 : f32 to vector<8x64xf32>
    %333 = arith.mulf %332, %331 : vector<8x64xf32>
    %cst_117 = arith.constant 5.000000e-01 : f32
    %334 = vector.broadcast %cst_117 : f32 to vector<8x64xf32>
    %335 = arith.addf %333, %334 : vector<8x64xf32>
    %336 = vector.extract_strided_slice %325 {offsets = [0, 128], sizes = [8, 64], strides = [1, 1]} : vector<8x256xf32> to vector<8x64xf32>
    %337 = vector.extract_strided_slice %325 {offsets = [0, 192], sizes = [8, 64], strides = [1, 1]} : vector<8x256xf32> to vector<8x64xf32>
    %cst_118 = arith.constant 5.000000e-01 : f32
    %338 = vector.broadcast %cst_118 : f32 to vector<8x64xf32>
    %339 = arith.mulf %338, %337 : vector<8x64xf32>
    %cst_119 = arith.constant 5.000000e-01 : f32
    %340 = vector.broadcast %cst_119 : f32 to vector<8x64xf32>
    %341 = arith.addf %339, %340 : vector<8x64xf32>
    %342 = arith.mulf %335, %319 : vector<8x64xf32>
    %343 = arith.mulf %330, %336 : vector<8x64xf32>
    %344 = arith.addf %342, %343 : vector<8x64xf32>
    %345 = math.tanh %344 : vector<8x64xf32>
    %346 = arith.mulf %341, %345 : vector<8x64xf32>
    %347 = arith.truncf %346 : vector<8x64xf32> to vector<8x64xbf16>
    %cst_120 = arith.constant dense<0.000000e+00> : vector<8x256xf32>
    %348 = tpu.matmul %347, %244, %cst_120 {dimension_numbers = #tpu.dot_dimension_numbers<[1], [0], [0], [1], [0, 0, 1, 1], [], []>} : vector<8x64xbf16>, vector<64x256xbf16>, vector<8x256xf32> -> vector<8x256xf32>
    %349 = arith.addf %239, %348 : vector<8x256xf32>
    %350 = math.tanh %349 : vector<8x256xf32>
    %351 = vector.extract_strided_slice %350 {offsets = [0, 0], sizes = [8, 64], strides = [1, 1]} : vector<8x256xf32> to vector<8x64xf32>
    %cst_121 = arith.constant 5.000000e-01 : f32
    %352 = vector.broadcast %cst_121 : f32 to vector<8x64xf32>
    %353 = arith.mulf %352, %351 : vector<8x64xf32>
    %cst_122 = arith.constant 5.000000e-01 : f32
    %354 = vector.broadcast %cst_122 : f32 to vector<8x64xf32>
    %355 = arith.addf %353, %354 : vector<8x64xf32>
    %356 = vector.extract_strided_slice %350 {offsets = [0, 64], sizes = [8, 64], strides = [1, 1]} : vector<8x256xf32> to vector<8x64xf32>
    %cst_123 = arith.constant 5.000000e-01 : f32
    %357 = vector.broadcast %cst_123 : f32 to vector<8x64xf32>
    %358 = arith.mulf %357, %356 : vector<8x64xf32>
    %cst_124 = arith.constant 5.000000e-01 : f32
    %359 = vector.broadcast %cst_124 : f32 to vector<8x64xf32>
    %360 = arith.addf %358, %359 : vector<8x64xf32>
    %361 = vector.extract_strided_slice %350 {offsets = [0, 128], sizes = [8, 64], strides = [1, 1]} : vector<8x256xf32> to vector<8x64xf32>
    %362 = vector.extract_strided_slice %350 {offsets = [0, 192], sizes = [8, 64], strides = [1, 1]} : vector<8x256xf32> to vector<8x64xf32>
    %cst_125 = arith.constant 5.000000e-01 : f32
    %363 = vector.broadcast %cst_125 : f32 to vector<8x64xf32>
    %364 = arith.mulf %363, %362 : vector<8x64xf32>
    %cst_126 = arith.constant 5.000000e-01 : f32
    %365 = vector.broadcast %cst_126 : f32 to vector<8x64xf32>
    %366 = arith.addf %364, %365 : vector<8x64xf32>
    %367 = arith.mulf %360, %344 : vector<8x64xf32>
    %368 = arith.mulf %355, %361 : vector<8x64xf32>
    %369 = arith.addf %367, %368 : vector<8x64xf32>
    %370 = math.tanh %369 : vector<8x64xf32>
    %371 = arith.mulf %366, %370 : vector<8x64xf32>
    %372 = arith.truncf %371 : vector<8x64xf32> to vector<8x64xbf16>
    %cst_127 = arith.constant dense<0.000000e+00> : vector<8x256xf32>
    %373 = tpu.matmul %372, %244, %cst_127 {dimension_numbers = #tpu.dot_dimension_numbers<[1], [0], [0], [1], [0, 0, 1, 1], [], []>} : vector<8x64xbf16>, vector<64x256xbf16>, vector<8x256xf32> -> vector<8x256xf32>
    %374 = arith.addf %240, %373 : vector<8x256xf32>
    %375 = math.tanh %374 : vector<8x256xf32>
    %376 = vector.extract_strided_slice %375 {offsets = [0, 0], sizes = [8, 64], strides = [1, 1]} : vector<8x256xf32> to vector<8x64xf32>
    %cst_128 = arith.constant 5.000000e-01 : f32
    %377 = vector.broadcast %cst_128 : f32 to vector<8x64xf32>
    %378 = arith.mulf %377, %376 : vector<8x64xf32>
    %cst_129 = arith.constant 5.000000e-01 : f32
    %379 = vector.broadcast %cst_129 : f32 to vector<8x64xf32>
    %380 = arith.addf %378, %379 : vector<8x64xf32>
    %381 = vector.extract_strided_slice %375 {offsets = [0, 64], sizes = [8, 64], strides = [1, 1]} : vector<8x256xf32> to vector<8x64xf32>
    %cst_130 = arith.constant 5.000000e-01 : f32
    %382 = vector.broadcast %cst_130 : f32 to vector<8x64xf32>
    %383 = arith.mulf %382, %381 : vector<8x64xf32>
    %cst_131 = arith.constant 5.000000e-01 : f32
    %384 = vector.broadcast %cst_131 : f32 to vector<8x64xf32>
    %385 = arith.addf %383, %384 : vector<8x64xf32>
    %386 = vector.extract_strided_slice %375 {offsets = [0, 128], sizes = [8, 64], strides = [1, 1]} : vector<8x256xf32> to vector<8x64xf32>
    %387 = vector.extract_strided_slice %375 {offsets = [0, 192], sizes = [8, 64], strides = [1, 1]} : vector<8x256xf32> to vector<8x64xf32>
    %cst_132 = arith.constant 5.000000e-01 : f32
    %388 = vector.broadcast %cst_132 : f32 to vector<8x64xf32>
    %389 = arith.mulf %388, %387 : vector<8x64xf32>
    %cst_133 = arith.constant 5.000000e-01 : f32
    %390 = vector.broadcast %cst_133 : f32 to vector<8x64xf32>
    %391 = arith.addf %389, %390 : vector<8x64xf32>
    %392 = arith.mulf %385, %369 : vector<8x64xf32>
    %393 = arith.mulf %380, %386 : vector<8x64xf32>
    %394 = arith.addf %392, %393 : vector<8x64xf32>
    %395 = math.tanh %394 : vector<8x64xf32>
    %396 = arith.mulf %391, %395 : vector<8x64xf32>
    %397 = arith.truncf %396 : vector<8x64xf32> to vector<8x64xbf16>
    %cst_134 = arith.constant dense<0.000000e+00> : vector<8x256xf32>
    %398 = tpu.matmul %397, %244, %cst_134 {dimension_numbers = #tpu.dot_dimension_numbers<[1], [0], [0], [1], [0, 0, 1, 1], [], []>} : vector<8x64xbf16>, vector<64x256xbf16>, vector<8x256xf32> -> vector<8x256xf32>
    %399 = arith.addf %241, %398 : vector<8x256xf32>
    %400 = math.tanh %399 : vector<8x256xf32>
    %401 = vector.extract_strided_slice %400 {offsets = [0, 0], sizes = [8, 64], strides = [1, 1]} : vector<8x256xf32> to vector<8x64xf32>
    %cst_135 = arith.constant 5.000000e-01 : f32
    %402 = vector.broadcast %cst_135 : f32 to vector<8x64xf32>
    %403 = arith.mulf %402, %401 : vector<8x64xf32>
    %cst_136 = arith.constant 5.000000e-01 : f32
    %404 = vector.broadcast %cst_136 : f32 to vector<8x64xf32>
    %405 = arith.addf %403, %404 : vector<8x64xf32>
    %406 = vector.extract_strided_slice %400 {offsets = [0, 64], sizes = [8, 64], strides = [1, 1]} : vector<8x256xf32> to vector<8x64xf32>
    %cst_137 = arith.constant 5.000000e-01 : f32
    %407 = vector.broadcast %cst_137 : f32 to vector<8x64xf32>
    %408 = arith.mulf %407, %406 : vector<8x64xf32>
    %cst_138 = arith.constant 5.000000e-01 : f32
    %409 = vector.broadcast %cst_138 : f32 to vector<8x64xf32>
    %410 = arith.addf %408, %409 : vector<8x64xf32>
    %411 = vector.extract_strided_slice %400 {offsets = [0, 128], sizes = [8, 64], strides = [1, 1]} : vector<8x256xf32> to vector<8x64xf32>
    %412 = vector.extract_strided_slice %400 {offsets = [0, 192], sizes = [8, 64], strides = [1, 1]} : vector<8x256xf32> to vector<8x64xf32>
    %cst_139 = arith.constant 5.000000e-01 : f32
    %413 = vector.broadcast %cst_139 : f32 to vector<8x64xf32>
    %414 = arith.mulf %413, %412 : vector<8x64xf32>
    %cst_140 = arith.constant 5.000000e-01 : f32
    %415 = vector.broadcast %cst_140 : f32 to vector<8x64xf32>
    %416 = arith.addf %414, %415 : vector<8x64xf32>
    %417 = arith.mulf %410, %394 : vector<8x64xf32>
    %418 = arith.mulf %405, %411 : vector<8x64xf32>
    %419 = arith.addf %417, %418 : vector<8x64xf32>
    %420 = math.tanh %419 : vector<8x64xf32>
    %421 = arith.mulf %416, %420 : vector<8x64xf32>
    %422 = arith.truncf %421 : vector<8x64xf32> to vector<8x64xbf16>
    %cst_141 = arith.constant dense<0.000000e+00> : vector<8x256xf32>
    %423 = tpu.matmul %422, %244, %cst_141 {dimension_numbers = #tpu.dot_dimension_numbers<[1], [0], [0], [1], [0, 0, 1, 1], [], []>} : vector<8x64xbf16>, vector<64x256xbf16>, vector<8x256xf32> -> vector<8x256xf32>
    %424 = arith.addf %242, %423 : vector<8x256xf32>
    %425 = math.tanh %424 : vector<8x256xf32>
    %426 = vector.extract_strided_slice %425 {offsets = [0, 0], sizes = [8, 64], strides = [1, 1]} : vector<8x256xf32> to vector<8x64xf32>
    %cst_142 = arith.constant 5.000000e-01 : f32
    %427 = vector.broadcast %cst_142 : f32 to vector<8x64xf32>
    %428 = arith.mulf %427, %426 : vector<8x64xf32>
    %cst_143 = arith.constant 5.000000e-01 : f32
    %429 = vector.broadcast %cst_143 : f32 to vector<8x64xf32>
    %430 = arith.addf %428, %429 : vector<8x64xf32>
    %431 = vector.extract_strided_slice %425 {offsets = [0, 64], sizes = [8, 64], strides = [1, 1]} : vector<8x256xf32> to vector<8x64xf32>
    %cst_144 = arith.constant 5.000000e-01 : f32
    %432 = vector.broadcast %cst_144 : f32 to vector<8x64xf32>
    %433 = arith.mulf %432, %431 : vector<8x64xf32>
    %cst_145 = arith.constant 5.000000e-01 : f32
    %434 = vector.broadcast %cst_145 : f32 to vector<8x64xf32>
    %435 = arith.addf %433, %434 : vector<8x64xf32>
    %436 = vector.extract_strided_slice %425 {offsets = [0, 128], sizes = [8, 64], strides = [1, 1]} : vector<8x256xf32> to vector<8x64xf32>
    %437 = vector.extract_strided_slice %425 {offsets = [0, 192], sizes = [8, 64], strides = [1, 1]} : vector<8x256xf32> to vector<8x64xf32>
    %cst_146 = arith.constant 5.000000e-01 : f32
    %438 = vector.broadcast %cst_146 : f32 to vector<8x64xf32>
    %439 = arith.mulf %438, %437 : vector<8x64xf32>
    %cst_147 = arith.constant 5.000000e-01 : f32
    %440 = vector.broadcast %cst_147 : f32 to vector<8x64xf32>
    %441 = arith.addf %439, %440 : vector<8x64xf32>
    %442 = arith.mulf %435, %419 : vector<8x64xf32>
    %443 = arith.mulf %430, %436 : vector<8x64xf32>
    %444 = arith.addf %442, %443 : vector<8x64xf32>
    %445 = math.tanh %444 : vector<8x64xf32>
    %446 = arith.mulf %441, %445 : vector<8x64xf32>
    %c0_148 = arith.constant 0 : index
    %c0_149 = arith.constant 0 : index
    %447 = vector.load %arg6[%c0_148, %c0_149] : memref<64x128xf32, #tpu.memory_space<vmem>>, vector<64x128xf32>
    %448 = vector.extract_strided_slice %446 {offsets = [0, 0], sizes = [8, 32], strides = [1, 1]} : vector<8x64xf32> to vector<8x32xf32>
    %449 = vector.extract_strided_slice %271 {offsets = [0, 32], sizes = [8, 32], strides = [1, 1]} : vector<8x64xf32> to vector<8x32xf32>
    %450 = vector.extract_strided_slice %447 {offsets = [0, 0], sizes = [32, 128], strides = [1, 1]} : vector<64x128xf32> to vector<32x128xf32>
    %cst_150 = arith.constant dense<0.000000e+00> : vector<8x128xf32>
    %451 = tpu.matmul %448, %450, %cst_150 {dimension_numbers = #tpu.dot_dimension_numbers<[1], [0], [0], [1], [0, 0, 1, 1], [], []>} : vector<8x32xf32>, vector<32x128xf32>, vector<8x128xf32> -> vector<8x128xf32>
    %452 = vector.extract_strided_slice %447 {offsets = [32, 0], sizes = [32, 128], strides = [1, 1]} : vector<64x128xf32> to vector<32x128xf32>
    %cst_151 = arith.constant dense<0.000000e+00> : vector<8x128xf32>
    %453 = tpu.matmul %449, %452, %cst_151 {dimension_numbers = #tpu.dot_dimension_numbers<[1], [0], [0], [1], [0, 0, 1, 1], [], []>} : vector<8x32xf32>, vector<32x128xf32>, vector<8x128xf32> -> vector<8x128xf32>
    %454 = arith.addf %451, %453 : vector<8x128xf32>
    %c0_152 = arith.constant 0 : index
    %c0_153 = arith.constant 0 : index
    %455 = vector.load %arg7[%c0_152, %c0_153] : memref<1x128xf32, #tpu.memory_space<vmem>>, vector<1x128xf32>
    %456 = vector.broadcast %455 : vector<1x128xf32> to vector<8x128xf32>
    %457 = arith.addf %454, %456 : vector<8x128xf32>
    %c0_154 = arith.constant 0 : index
    %c0_155 = arith.constant 0 : index
    %458 = vector.load %arg8[%c0_154, %c0_155] : memref<8x128xf32, #tpu.memory_space<vmem>>, vector<8x128xf32>
    tpu.vector_store %arg8[%c0_154, %c0_155], %457 {strides = array<i32>} : memref<8x128xf32, #tpu.memory_space<vmem>>, vector<8x128xf32>,
    return
  }
  func.func @transform_0(%arg0: i32) -> (i32, i32, i32) {
    %c0_i32 = arith.constant 0 : i32
    %c0_i32_0 = arith.constant 0 : i32
    %c0_i32_1 = arith.constant 0 : i32
    %c0_i32_2 = arith.constant 0 : i32
    return %c0_i32, %c0_i32_0, %c0_i32_1 : i32, i32, i32
  }
  func.func @transform_1(%arg0: i32) -> (i32, i32, i32) {
    %c0_i32 = arith.constant 0 : i32
    %c0_i32_0 = arith.constant 0 : i32
    %c0_i32_1 = arith.constant 0 : i32
    %c0_i32_2 = arith.constant 0 : i32
    return %c0_i32, %c0_i32_0, %c0_i32_1 : i32, i32, i32
  }
  func.func @transform_2(%arg0: i32) -> (i32, i32, i32) {
    %c0_i32 = arith.constant 0 : i32
    %c0_i32_0 = arith.constant 0 : i32
    %c0_i32_1 = arith.constant 0 : i32
    %c0_i32_2 = arith.constant 0 : i32
    return %c0_i32, %c0_i32_0, %c0_i32_1 : i32, i32, i32
  }
  func.func @transform_3(%arg0: i32) -> (i32, i32, i32) {
    %c0_i32 = arith.constant 0 : i32
    %c0_i32_0 = arith.constant 0 : i32
    %c0_i32_1 = arith.constant 0 : i32
    %c0_i32_2 = arith.constant 0 : i32
    return %c0_i32, %c0_i32_0, %c0_i32_1 : i32, i32, i32
  }
  func.func @transform_4(%arg0: i32) -> (i32, i32, i32) {
    %c0_i32 = arith.constant 0 : i32
    %c0_i32_0 = arith.constant 0 : i32
    %c0_i32_1 = arith.constant 0 : i32
    %c0_i32_2 = arith.constant 0 : i32
    return %c0_i32, %c0_i32_0, %c0_i32_1 : i32, i32, i32
  }
  func.func @transform_5(%arg0: i32) -> (i32, i32) {
    %c0_i32 = arith.constant 0 : i32
    %c0_i32_0 = arith.constant 0 : i32
    %c0_i32_1 = arith.constant 0 : i32
    return %c0_i32, %c0_i32_0 : i32, i32
  }
  func.func @transform_6(%arg0: i32) -> (i32, i32) {
    %c0_i32 = arith.constant 0 : i32
    %c0_i32_0 = arith.constant 0 : i32
    %c0_i32_1 = arith.constant 0 : i32
    return %c0_i32, %c0_i32_0 : i32, i32
  }
  func.func @transform_7(%arg0: i32) -> (i32, i32) {
    %c0_i32 = arith.constant 0 : i32
    %c0_i32_0 = arith.constant 0 : i32
    %c0_i32_1 = arith.constant 0 : i32
    return %c0_i32, %c0_i32_0 : i32, i32
  }
}

</mosaic_0001>

<llo_original>
// kernel: mul.55
$region0: #{mul.55}
  #allocation0 [shape = 's32[1]{0}', space=sflag, size = 0x4, scoped, tag = 'scoped memory for mul.55']
  %s0 = inlined_call_operand.vmem [shape: f32[1,1,256], index: 0, kind: input, shape index: {}]
  %s1 = inlined_call_operand.vmem [shape: f32[1,1,256], index: 1, kind: input, shape index: {}]
  %s2 = inlined_call_operand.vmem [shape: f32[1,1,256], index: 2, kind: output, shape index: {}]
  %v3 = vld [vmem:[%s0] sm:$0x1]
  %v4 = vld [vmem:[%s1] sm:$0x1]
  %5 = xla_tuple %v3, %v4
  %6 = xla_tuple %5
  %v7 = vmul.f32 %v3, %v4
  %8 = xla_tuple %v7
  %9 = vst [vmem:[%s2] sm:$0x1] %v7
  %s10 = scalar_lea.vmem %s0, 1
  %v11 = vld [vmem:[%s10] sm:$0x1]
  %s12 = scalar_lea.vmem %s1, 1
  %v13 = vld [vmem:[%s12] sm:$0x1]
  %14 = xla_tuple %v11, %v13
  %15 = xla_tuple %14
  %v16 = vmul.f32 %v11, %v13
  %17 = xla_tuple %v16
  %s18 = scalar_lea.vmem %s2, 1
  %19 = vst [vmem:[%s18] sm:$0x1] %v16

// kernel: lstm_model_forward.1
$region0: #{lstm_model_forward.1}
  #allocation0 [shape = 'u32[]', space=smem, size = 0x4, offset = 0x4, fixed_abs, tag = 'smem constant byte address 0x4 - core index']
  #allocation1 [shape = 'u32[144,128]{1,0:T(1,128)}', space=vmem, size = 0x12000, scoped, tag = 'internal scratch']
  %s0 = inlined_call_operand.vmem [shape: f32[8,8,256], index: 0, kind: input, shape index: {}]
  %s1 = inlined_call_operand.vmem [shape: bf16[2,64,256], index: 1, kind: input, shape index: {}]
  %s2 = inlined_call_operand.vmem [shape: bf16[1,64,256], index: 2, kind: input, shape index: {}]
  %s3 = inlined_call_operand.vmem [shape: bf16[1,64,256], index: 3, kind: input, shape index: {}]
  %s4 = inlined_call_operand.vmem [shape: f32[1,1,256], index: 4, kind: input, shape index: {}]
  %s5 = inlined_call_operand.vmem [shape: f32[64,128], index: 5, kind: input, shape index: {}]
  %s6 = inlined_call_operand.vmem [shape: f32[1,128], index: 6, kind: input, shape index: {}]
  %s7 = inlined_call_operand.vmem [shape: f32[8,128], index: 7, kind: output, shape index: {}]
  %s8 = sld [smem:[#allocation0]]
  $region38: #{lstm_model_forward.1} parent=0
    _
  %s10 = ssub.s32 1, %s8
  %s11 = scalar_select 0, %s10, %s8
  // Predicated region
  $region2: #{lstm_model_forward.1} parent=0 // pred_check
    _
  $region3: #{lstm_model_forward.1} parent=0 // pred_check_branch
    %13 = sbr.rel (0) target = $region5
  $region4: #{lstm_model_forward.1} parent=0 // pred_region
    _
  $region5: #{lstm_model_forward.1} parent=0 // pred_fallthru
    _
  // Predicated region
  $region6: #{lstm_model_forward.1} parent=0 // pred_check
    _
  $region7: #{lstm_model_forward.1} parent=0 // pred_check_branch
    %15 = sbr.rel (0) target = $region9
  $region8: #{lstm_model_forward.1} parent=0 // pred_region
    _
  $region9: #{lstm_model_forward.1} parent=0 // pred_fallthru
    _
  // Predicated region
  $region10: #{lstm_model_forward.1} parent=0 // pred_check
    _
  $region11: #{lstm_model_forward.1} parent=0 // pred_check_branch
    %17 = sbr.rel (0) target = $region13
  $region12: #{lstm_model_forward.1} parent=0 // pred_region
    _
  $region13: #{lstm_model_forward.1} parent=0 // pred_fallthru
    _
  // Predicated region
  $region14: #{lstm_model_forward.1} parent=0 // pred_check
    _
  $region15: #{lstm_model_forward.1} parent=0 // pred_check_branch
    %19 = sbr.rel (0) target = $region17
  $region16: #{lstm_model_forward.1} parent=0 // pred_region
    _
  $region17: #{lstm_model_forward.1} parent=0 // pred_fallthru
    _
  // Predicated region
  $region18: #{lstm_model_forward.1} parent=0 // pred_check
    _
  $region19: #{lstm_model_forward.1} parent=0 // pred_check_branch
    %21 = sbr.rel (0) target = $region21
  $region20: #{lstm_model_forward.1} parent=0 // pred_region
    _
  $region21: #{lstm_model_forward.1} parent=0 // pred_fallthru
    _
  // Predicated region
  $region22: #{lstm_model_forward.1} parent=0 // pred_check
    _
  $region23: #{lstm_model_forward.1} parent=0 // pred_check_branch
    %23 = sbr.rel (0) target = $region25
  $region24: #{lstm_model_forward.1} parent=0 // pred_region
    _
  $region25: #{lstm_model_forward.1} parent=0 // pred_fallthru
    _
  // Predicated region
  $region26: #{lstm_model_forward.1} parent=0 // pred_check
    _
  $region27: #{lstm_model_forward.1} parent=0 // pred_check_branch
    %25 = sbr.rel (0) target = $region29
  $region28: #{lstm_model_forward.1} parent=0 // pred_region
    _
  $region29: #{lstm_model_forward.1} parent=0 // pred_fallthru
    _
  %v27 = vld [vmem:[%s0] sm:$0xff]
  %v28 = vld [vmem:[%s0 + $0x8] sm:$0xff]
  %s29 = scalar_lea.vmem %s0, 16
  %v30 = vld [vmem:[%s29] sm:$0xff]
  %v31 = vld [vmem:[%s29 + $0x8] sm:$0xff]
  %s32 = scalar_lea.vmem %s0, 32
  %v33 = vld [vmem:[%s32] sm:$0xff]
  %v34 = vld [vmem:[%s32 + $0x8] sm:$0xff]
  %s35 = scalar_lea.vmem %s0, 48
  %v36 = vld [vmem:[%s35] sm:$0xff]
  %v37 = vld [vmem:[%s35 + $0x8] sm:$0xff]
  %s38 = scalar_lea.vmem %s0, 64
  %v39 = vld [vmem:[%s38] sm:$0xff]
  %v40 = vld [vmem:[%s38 + $0x8] sm:$0xff]
  %s41 = scalar_lea.vmem %s0, 80
  %v42 = vld [vmem:[%s41] sm:$0xff]
  %v43 = vld [vmem:[%s41 + $0x8] sm:$0xff]
  %s44 = scalar_lea.vmem %s0, 96
  %v45 = vld [vmem:[%s44] sm:$0xff]
  %v46 = vld [vmem:[%s44 + $0x8] sm:$0xff]
  %s47 = scalar_lea.vmem %s0, 112
  %v48 = vld [vmem:[%s47] sm:$0xff]
  %v49 = vld [vmem:[%s47 + $0x8] sm:$0xff]
  %v50 = vld [vmem:[%s1] sm:$0xff]
  %v51 = vld [vmem:[%s1 + $0x8] sm:$0xff]
  %v52 = vld [vmem:[%s1 + $0x10] sm:$0xff]
  %v53 = vld [vmem:[%s1 + $0x18] sm:$0xff]
  %v54 = vld [vmem:[%s1 + $0x20] sm:$0xff]
  %v55 = vld [vmem:[%s1 + $0x28] sm:$0xff]
  %v56 = vld [vmem:[%s1 + $0x30] sm:$0xff]
  %v57 = vld [vmem:[%s1 + $0x38] sm:$0xff]
  %v66 = vunpack.c.l.b16 %v50
  %v67 = vunpack.c.h.b16 %v50
  %v68 = vunpack.c.l.b16 %v51
  %v69 = vunpack.c.h.b16 %v51
  %v70 = vunpack.c.l.b16 %v52
  %v71 = vunpack.c.h.b16 %v52
  %v72 = vunpack.c.l.b16 %v53
  %v73 = vunpack.c.h.b16 %v53
  %v74 = vunpack.c.l.b16 %v54
  %v75 = vunpack.c.h.b16 %v54
  %v76 = vunpack.c.l.b16 %v55
  %v77 = vunpack.c.h.b16 %v55
  %v78 = vunpack.c.l.b16 %v56
  %v79 = vunpack.c.h.b16 %v56
  %v80 = vunpack.c.l.b16 %v57
  %v81 = vunpack.c.h.b16 %v57
  %v82 = vpack.c.b16 %v68, %v66
  %v83 = vpack.c.b16 %v69, %v67
  %v84 = vpack.c.b16 %v72, %v70
  %v85 = vpack.c.b16 %v73, %v71
  %v86 = vpack.c.b16 %v76, %v74
  %v87 = vpack.c.b16 %v77, %v75
  %v88 = vpack.c.b16 %v80, %v78
  %v89 = vpack.c.b16 %v81, %v79
  %vm98 = vcmask 523264
  %v100 = vsel %vm98, 0, 0
  %102 = vmatprep.subr.bf16.mxu0 %v83
  %103 = vmatpush1.bf16.msra.mxu0 %v82
  %104 = vmatprep.subr.bf16.mxu0 %v85
  %105 = vmatpush1.bf16.msra.mxu0 %v84
  %106 = vmatprep.subr.bf16.mxu0 %v87
  %107 = vmatpush1.bf16.msra.mxu0 %v86
  %108 = vmatprep.subr.bf16.mxu0 %v89
  %109 = vmatpush1.bf16.msra.mxu0 %v88
  %110 = vmatprep.subr.bf16.mxu0 0
  %111 = vmatpush1.bf16.msra.mxu0 0
  %112 = vmatprep.subr.bf16.mxu0 0
  %113 = vmatpush1.bf16.msra.mxu0 0
  %114 = vmatprep.subr.bf16.mxu0 0
  %115 = vmatpush1.bf16.msra.mxu0 0
  %116 = vmatprep.subr.bf16.mxu0 0
  %117 = vmatpush1.bf16.msra.mxu0 0
  %118 = vmatprep.subr.bf16.mxu0 0
  %119 = vmatpush1.bf16.msra.mxu0 0
  %120 = vmatprep.subr.bf16.mxu0 0
  %121 = vmatpush1.bf16.msra.mxu0 0
  %122 = vmatprep.subr.bf16.mxu0 0
  %123 = vmatpush1.bf16.msra.mxu0 0
  %124 = vmatprep.subr.bf16.mxu0 0
  %125 = vmatpush1.bf16.msra.mxu0 0
  %126 = vmatprep.subr.bf16.mxu0 0
  %127 = vmatpush1.bf16.msra.mxu0 0
  %128 = vmatprep.subr.bf16.mxu0 0
  %129 = vmatpush1.bf16.msra.mxu0 0
  %130 = vmatprep.subr.bf16.mxu0 0
  %131 = vmatpush1.bf16.msra.mxu0 0
  %132 = vmatprep.subr.bf16.mxu0 0
  %133 = vmatpush1.bf16.msra.mxu0 0
  %134 = vmatprep.mubr.bf16.mxu0 0
  %135 = vmatmul.mubr.bf16.gmra.mrb[0].mxu0 %v100
  %v136 = vpop.f32.mrb[0].mxu0
  %v137 = vadd.f32 0.0, %v136
  %v138 = vpop.f32.mrb[0].mxu0
  %v139 = vadd.f32 0.0, %v138
  %v140 = vpop.f32.mrb[0].mxu0
  %v141 = vpop.f32.mrb[0].mxu0
  %142 = vdwg.mxu0
  %v143 = vadd.f32 %v27, %v137
  %v144 = vadd.f32 %v28, %v139
  %v145 = vtanh.pop %v143
  %v146 = vtanh.pop %v144
  %v147 = vmul.f32 %v145, 0.5
  %v148 = vadd.f32 %v147, 0.5
  %v149 = vmul.f32 %v146, 0.5
  %v150 = vadd.f32 %v149, 0.5
  %v151 = vmul.f32 %v148, 0.0
  %v152 = vmul.f32 %v148, %v146
  %154 = vrot.lane.b32.xlu0 %v152, 64
  %v155 = vpop.permute.xlu0 %154
  %v157 = vadd.f32 %v151, %v155
  %v158 = vtanh.pop %v157
  %v159 = vmul.f32 %v150, %v158
  %v160 = vpack.c.bf16 %v159, %v159
  %162 = vrot.lane.b32.xlu0 %v160, 64
  %v163 = vpop.permute.xlu0 %162
  %v165 = vsel %vm98, %v163, 0
  %167 = vmatprep.subr.bf16.mxu0 %v83
  %168 = vmatpush1.bf16.msra.mxu0 %v82
  %169 = vmatprep.subr.bf16.mxu0 %v85
  %170 = vmatpush1.bf16.msra.mxu0 %v84
  %171 = vmatprep.subr.bf16.mxu0 %v87
  %172 = vmatpush1.bf16.msra.mxu0 %v86
  %173 = vmatprep.subr.bf16.mxu0 %v89
  %174 = vmatpush1.bf16.msra.mxu0 %v88
  %175 = vmatprep.subr.bf16.mxu0 0
  %176 = vmatpush1.bf16.msra.mxu0 0
  %177 = vmatprep.subr.bf16.mxu0 0
  %178 = vmatpush1.bf16.msra.mxu0 0
  %179 = vmatprep.subr.bf16.mxu0 0
  %180 = vmatpush1.bf16.msra.mxu0 0
  %181 = vmatprep.subr.bf16.mxu0 0
  %182 = vmatpush1.bf16.msra.mxu0 0
  %183 = vmatprep.subr.bf16.mxu0 0
  %184 = vmatpush1.bf16.msra.mxu0 0
  %185 = vmatprep.subr.bf16.mxu0 0
  %186 = vmatpush1.bf16.msra.mxu0 0
  %187 = vmatprep.subr.bf16.mxu0 0
  %188 = vmatpush1.bf16.msra.mxu0 0
  %189 = vmatprep.subr.bf16.mxu0 0
  %190 = vmatpush1.bf16.msra.mxu0 0
  %191 = vmatprep.subr.bf16.mxu0 0
  %192 = vmatpush1.bf16.msra.mxu0 0
  %193 = vmatprep.subr.bf16.mxu0 0
  %194 = vmatpush1.bf16.msra.mxu0 0
  %195 = vmatprep.subr.bf16.mxu0 0
  %196 = vmatpush1.bf16.msra.mxu0 0
  %197 = vmatprep.subr.bf16.mxu0 0
  %198 = vmatpush1.bf16.msra.mxu0 0
  %199 = vmatprep.mubr.bf16.mxu0 0
  %200 = vmatmul.mubr.bf16.gmra.mrb[0].mxu0 %v165
  %v201 = vpop.f32.mrb[0].mxu0
  %v202 = vadd.f32 0.0, %v201
  %v203 = vpop.f32.mrb[0].mxu0
  %v204 = vadd.f32 0.0, %v203
  %v205 = vpop.f32.mrb[0].mxu0
  %v206 = vpop.f32.mrb[0].mxu0
  %207 = vdwg.mxu0
  %v208 = vadd.f32 %v30, %v202
  %v209 = vadd.f32 %v31, %v204
  %v210 = vtanh.pop %v208
  %v211 = vtanh.pop %v209
  %v212 = vmul.f32 %v210, 0.5
  %v213 = vadd.f32 %v212, 0.5
  %v214 = vmul.f32 %v211, 0.5
  %v215 = vadd.f32 %v214, 0.5
  %v216 = vmul.f32 %v213, %v157
  %v217 = vmul.f32 %v213, %v211
  %219 = vrot.lane.b32.xlu0 %v217, 64
  %v220 = vpop.permute.xlu0 %219
  %v222 = vadd.f32 %v216, %v220
  %v223 = vtanh.pop %v222
  %v224 = vmul.f32 %v215, %v223
  %v225 = vpack.c.bf16 %v224, %v224
  %227 = vrot.lane.b32.xlu0 %v225, 64
  %v228 = vpop.permute.xlu0 %227
  %v230 = vsel %vm98, %v228, 0
  %232 = vmatprep.subr.bf16.mxu0 %v83
  %233 = vmatpush1.bf16.msra.mxu0 %v82
  %234 = vmatprep.subr.bf16.mxu0 %v85
  %235 = vmatpush1.bf16.msra.mxu0 %v84
  %236 = vmatprep.subr.bf16.mxu0 %v87
  %237 = vmatpush1.bf16.msra.mxu0 %v86
  %238 = vmatprep.subr.bf16.mxu0 %v89
  %239 = vmatpush1.bf16.msra.mxu0 %v88
  %240 = vmatprep.subr.bf16.mxu0 0
  %241 = vmatpush1.bf16.msra.mxu0 0
  %242 = vmatprep.subr.bf16.mxu0 0
  %243 = vmatpush1.bf16.msra.mxu0 0
  %244 = vmatprep.subr.bf16.mxu0 0
  %245 = vmatpush1.bf16.msra.mxu0 0
  %246 = vmatprep.subr.bf16.mxu0 0
  %247 = vmatpush1.bf16.msra.mxu0 0
  %248 = vmatprep.subr.bf16.mxu0 0
  %249 = vmatpush1.bf16.msra.mxu0 0
  %250 = vmatprep.subr.bf16.mxu0 0
  %251 = vmatpush1.bf16.msra.mxu0 0
  %252 = vmatprep.subr.bf16.mxu0 0
  %253 = vmatpush1.bf16.msra.mxu0 0
  %254 = vmatprep.subr.bf16.mxu0 0
  %255 = vmatpush1.bf16.msra.mxu0 0
  %256 = vmatprep.subr.bf16.mxu0 0
  %257 = vmatpush1.bf16.msra.mxu0 0
  %258 = vmatprep.subr.bf16.mxu0 0
  %259 = vmatpush1.bf16.msra.mxu0 0
  %260 = vmatprep.subr.bf16.mxu0 0
  %261 = vmatpush1.bf16.msra.mxu0 0
  %262 = vmatprep.subr.bf16.mxu0 0
  %263 = vmatpush1.bf16.msra.mxu0 0
  %264 = vmatprep.mubr.bf16.mxu0 0
  %265 = vmatmul.mubr.bf16.gmra.mrb[0].mxu0 %v230
  %v266 = vpop.f32.mrb[0].mxu0
  %v267 = vadd.f32 0.0, %v266
  %v268 = vpop.f32.mrb[0].mxu0
  %v269 = vadd.f32 0.0, %v268
  %v270 = vpop.f32.mrb[0].mxu0
  %v271 = vpop.f32.mrb[0].mxu0
  %272 = vdwg.mxu0
  %v273 = vadd.f32 %v33, %v267
  %v274 = vadd.f32 %v34, %v269
  %v275 = vtanh.pop %v273
  %v276 = vtanh.pop %v274
  %v277 = vmul.f32 %v275, 0.5
  %v278 = vadd.f32 %v277, 0.5
  %v279 = vmul.f32 %v276, 0.5
  %v280 = vadd.f32 %v279, 0.5
  %v281 = vmul.f32 %v278, %v222
  %v282 = vmul.f32 %v278, %v276
  %284 = vrot.lane.b32.xlu0 %v282, 64
  %v285 = vpop.permute.xlu0 %284
  %v287 = vadd.f32 %v281, %v285
  %v288 = vtanh.pop %v287
  %v289 = vmul.f32 %v280, %v288
  %v290 = vpack.c.bf16 %v289, %v289
  %292 = vrot.lane.b32.xlu0 %v290, 64
  %v293 = vpop.permute.xlu0 %292
  %v295 = vsel %vm98, %v293, 0
  %297 = vmatprep.subr.bf16.mxu0 %v83
  %298 = vmatpush1.bf16.msra.mxu0 %v82
  %299 = vmatprep.subr.bf16.mxu0 %v85
  %300 = vmatpush1.bf16.msra.mxu0 %v84
  %301 = vmatprep.subr.bf16.mxu0 %v87
  %302 = vmatpush1.bf16.msra.mxu0 %v86
  %303 = vmatprep.subr.bf16.mxu0 %v89
  %304 = vmatpush1.bf16.msra.mxu0 %v88
  %305 = vmatprep.subr.bf16.mxu0 0
  %306 = vmatpush1.bf16.msra.mxu0 0
  %307 = vmatprep.subr.bf16.mxu0 0
  %308 = vmatpush1.bf16.msra.mxu0 0
  %309 = vmatprep.subr.bf16.mxu0 0
  %310 = vmatpush1.bf16.msra.mxu0 0
  %311 = vmatprep.subr.bf16.mxu0 0
  %312 = vmatpush1.bf16.msra.mxu0 0
  %313 = vmatprep.subr.bf16.mxu0 0
  %314 = vmatpush1.bf16.msra.mxu0 0
  %315 = vmatprep.subr.bf16.mxu0 0
  %316 = vmatpush1.bf16.msra.mxu0 0
  %317 = vmatprep.subr.bf16.mxu0 0
  %318 = vmatpush1.bf16.msra.mxu0 0
  %319 = vmatprep.subr.bf16.mxu0 0
  %320 = vmatpush1.bf16.msra.mxu0 0
  %321 = vmatprep.subr.bf16.mxu0 0
  %322 = vmatpush1.bf16.msra.mxu0 0
  %323 = vmatprep.subr.bf16.mxu0 0
  %324 = vmatpush1.bf16.msra.mxu0 0
  %325 = vmatprep.subr.bf16.mxu0 0
  %326 = vmatpush1.bf16.msra.mxu0 0
  %327 = vmatprep.subr.bf16.mxu0 0
  %328 = vmatpush1.bf16.msra.mxu0 0
  %329 = vmatprep.mubr.bf16.mxu0 0
  %330 = vmatmul.mubr.bf16.gmra.mrb[0].mxu0 %v295
  %v331 = vpop.f32.mrb[0].mxu0
  %v332 = vadd.f32 0.0, %v331
  %v333 = vpop.f32.mrb[0].mxu0
  %v334 = vadd.f32 0.0, %v333
  %v335 = vpop.f32.mrb[0].mxu0
  %v336 = vpop.f32.mrb[0].mxu0
  %337 = vdwg.mxu0
  %v338 = vadd.f32 %v36, %v332
  %v339 = vadd.f32 %v37, %v334
  %v340 = vtanh.pop %v338
  %v341 = vtanh.pop %v339
  %v342 = vmul.f32 %v340, 0.5
  %v343 = vadd.f32 %v342, 0.5
  %v344 = vmul.f32 %v341, 0.5
  %v345 = vadd.f32 %v344, 0.5
  %v346 = vmul.f32 %v343, %v287
  %v347 = vmul.f32 %v343, %v341
  %349 = vrot.lane.b32.xlu0 %v347, 64
  %v350 = vpop.permute.xlu0 %349
  %v352 = vadd.f32 %v346, %v350
  %v353 = vtanh.pop %v352
  %v354 = vmul.f32 %v345, %v353
  %v355 = vpack.c.bf16 %v354, %v354
  %357 = vrot.lane.b32.xlu0 %v355, 64
  %v358 = vpop.permute.xlu0 %357
  %v360 = vsel %vm98, %v358, 0
  %362 = vmatprep.subr.bf16.mxu0 %v83
  %363 = vmatpush1.bf16.msra.mxu0 %v82
  %364 = vmatprep.subr.bf16.mxu0 %v85
  %365 = vmatpush1.bf16.msra.mxu0 %v84
  %366 = vmatprep.subr.bf16.mxu0 %v87
  %367 = vmatpush1.bf16.msra.mxu0 %v86
  %368 = vmatprep.subr.bf16.mxu0 %v89
  %369 = vmatpush1.bf16.msra.mxu0 %v88
  %370 = vmatprep.subr.bf16.mxu0 0
  %371 = vmatpush1.bf16.msra.mxu0 0
  %372 = vmatprep.subr.bf16.mxu0 0
  %373 = vmatpush1.bf16.msra.mxu0 0
  %374 = vmatprep.subr.bf16.mxu0 0
  %375 = vmatpush1.bf16.msra.mxu0 0
  %376 = vmatprep.subr.bf16.mxu0 0
  %377 = vmatpush1.bf16.msra.mxu0 0
  %378 = vmatprep.subr.bf16.mxu0 0
  %379 = vmatpush1.bf16.msra.mxu0 0
  %380 = vmatprep.subr.bf16.mxu0 0
  %381 = vmatpush1.bf16.msra.mxu0 0
  %382 = vmatprep.subr.bf16.mxu0 0
  %383 = vmatpush1.bf16.msra.mxu0 0
  %384 = vmatprep.subr.bf16.mxu0 0
  %385 = vmatpush1.bf16.msra.mxu0 0
  %386 = vmatprep.subr.bf16.mxu0 0
  %387 = vmatpush1.bf16.msra.mxu0 0
  %388 = vmatprep.subr.bf16.mxu0 0
  %389 = vmatpush1.bf16.msra.mxu0 0
  %390 = vmatprep.subr.bf16.mxu0 0
  %391 = vmatpush1.bf16.msra.mxu0 0
  %392 = vmatprep.subr.bf16.mxu0 0
  %393 = vmatpush1.bf16.msra.mxu0 0
  %394 = vmatprep.mubr.bf16.mxu0 0
  %395 = vmatmul.mubr.bf16.gmra.mrb[0].mxu0 %v360
  %v396 = vpop.f32.mrb[0].mxu0
  %v397 = vadd.f32 0.0, %v396
  %v398 = vpop.f32.mrb[0].mxu0
  %v399 = vadd.f32 0.0, %v398
  %v400 = vpop.f32.mrb[0].mxu0
  %v401 = vpop.f32.mrb[0].mxu0
  %402 = vdwg.mxu0
  %v403 = vadd.f32 %v39, %v397
  %v404 = vadd.f32 %v40, %v399
  %v405 = vtanh.pop %v403
  %v406 = vtanh.pop %v404
  %v407 = vmul.f32 %v405, 0.5
  %v408 = vadd.f32 %v407, 0.5
  %v409 = vmul.f32 %v406, 0.5
  %v410 = vadd.f32 %v409, 0.5
  %v411 = vmul.f32 %v408, %v352
  %v412 = vmul.f32 %v408, %v406
  %414 = vrot.lane.b32.xlu0 %v412, 64
  %v415 = vpop.permute.xlu0 %414
  %v417 = vadd.f32 %v411, %v415
  %v418 = vtanh.pop %v417
  %v419 = vmul.f32 %v410, %v418
  %v420 = vpack.c.bf16 %v419, %v419
  %422 = vrot.lane.b32.xlu0 %v420, 64
  %v423 = vpop.permute.xlu0 %422
  %v425 = vsel %vm98, %v423, 0
  %427 = vmatprep.subr.bf16.mxu0 %v83
  %428 = vmatpush1.bf16.msra.mxu0 %v82
  %429 = vmatprep.subr.bf16.mxu0 %v85
  %430 = vmatpush1.bf16.msra.mxu0 %v84
  %431 = vmatprep.subr.bf16.mxu0 %v87
  %432 = vmatpush1.bf16.msra.mxu0 %v86
  %433 = vmatprep.subr.bf16.mxu0 %v89
  %434 = vmatpush1.bf16.msra.mxu0 %v88
  %435 = vmatprep.subr.bf16.mxu0 0
  %436 = vmatpush1.bf16.msra.mxu0 0
  %437 = vmatprep.subr.bf16.mxu0 0
  %438 = vmatpush1.bf16.msra.mxu0 0
  %439 = vmatprep.subr.bf16.mxu0 0
  %440 = vmatpush1.bf16.msra.mxu0 0
  %441 = vmatprep.subr.bf16.mxu0 0
  %442 = vmatpush1.bf16.msra.mxu0 0
  %443 = vmatprep.subr.bf16.mxu0 0
  %444 = vmatpush1.bf16.msra.mxu0 0
  %445 = vmatprep.subr.bf16.mxu0 0
  %446 = vmatpush1.bf16.msra.mxu0 0
  %447 = vmatprep.subr.bf16.mxu0 0
  %448 = vmatpush1.bf16.msra.mxu0 0
  %449 = vmatprep.subr.bf16.mxu0 0
  %450 = vmatpush1.bf16.msra.mxu0 0
  %451 = vmatprep.subr.bf16.mxu0 0
  %452 = vmatpush1.bf16.msra.mxu0 0
  %453 = vmatprep.subr.bf16.mxu0 0
  %454 = vmatpush1.bf16.msra.mxu0 0
  %455 = vmatprep.subr.bf16.mxu0 0
  %456 = vmatpush1.bf16.msra.mxu0 0
  %457 = vmatprep.subr.bf16.mxu0 0
  %458 = vmatpush1.bf16.msra.mxu0 0
  %459 = vmatprep.mubr.bf16.mxu0 0
  %460 = vmatmul.mubr.bf16.gmra.mrb[0].mxu0 %v425
  %v461 = vpop.f32.mrb[0].mxu0
  %v462 = vadd.f32 0.0, %v461
  %v463 = vpop.f32.mrb[0].mxu0
  %v464 = vadd.f32 0.0, %v463
  %v465 = vpop.f32.mrb[0].mxu0
  %v466 = vpop.f32.mrb[0].mxu0
  %467 = vdwg.mxu0
  %v468 = vadd.f32 %v42, %v462
  %v469 = vadd.f32 %v43, %v464
  %v470 = vtanh.pop %v468
  %v471 = vtanh.pop %v469
  %v472 = vmul.f32 %v470, 0.5
  %v473 = vadd.f32 %v472, 0.5
  %v474 = vmul.f32 %v471, 0.5
  %v475 = vadd.f32 %v474, 0.5
  %v476 = vmul.f32 %v473, %v417
  %v477 = vmul.f32 %v473, %v471
  %479 = vrot.lane.b32.xlu0 %v477, 64
  %v480 = vpop.permute.xlu0 %479
  %v482 = vadd.f32 %v476, %v480
  %v483 = vtanh.pop %v482
  %v484 = vmul.f32 %v475, %v483
  %v485 = vpack.c.bf16 %v484, %v484
  %487 = vrot.lane.b32.xlu0 %v485, 64
  %v488 = vpop.permute.xlu0 %487
  %v490 = vsel %vm98, %v488, 0
  %492 = vmatprep.subr.bf16.mxu0 %v83
  %493 = vmatpush1.bf16.msra.mxu0 %v82
  %494 = vmatprep.subr.bf16.mxu0 %v85
  %495 = vmatpush1.bf16.msra.mxu0 %v84
  %496 = vmatprep.subr.bf16.mxu0 %v87
  %497 = vmatpush1.bf16.msra.mxu0 %v86
  %498 = vmatprep.subr.bf16.mxu0 %v89
  %499 = vmatpush1.bf16.msra.mxu0 %v88
  %500 = vmatprep.subr.bf16.mxu0 0
  %501 = vmatpush1.bf16.msra.mxu0 0
  %502 = vmatprep.subr.bf16.mxu0 0
  %503 = vmatpush1.bf16.msra.mxu0 0
  %504 = vmatprep.subr.bf16.mxu0 0
  %505 = vmatpush1.bf16.msra.mxu0 0
  %506 = vmatprep.subr.bf16.mxu0 0
  %507 = vmatpush1.bf16.msra.mxu0 0
  %508 = vmatprep.subr.bf16.mxu0 0
  %509 = vmatpush1.bf16.msra.mxu0 0
  %510 = vmatprep.subr.bf16.mxu0 0
  %511 = vmatpush1.bf16.msra.mxu0 0
  %512 = vmatprep.subr.bf16.mxu0 0
  %513 = vmatpush1.bf16.msra.mxu0 0
  %514 = vmatprep.subr.bf16.mxu0 0
  %515 = vmatpush1.bf16.msra.mxu0 0
  %516 = vmatprep.subr.bf16.mxu0 0
  %517 = vmatpush1.bf16.msra.mxu0 0
  %518 = vmatprep.subr.bf16.mxu0 0
  %519 = vmatpush1.bf16.msra.mxu0 0
  %520 = vmatprep.subr.bf16.mxu0 0
  %521 = vmatpush1.bf16.msra.mxu0 0
  %522 = vmatprep.subr.bf16.mxu0 0
  %523 = vmatpush1.bf16.msra.mxu0 0
  %524 = vmatprep.mubr.bf16.mxu0 0
  %525 = vmatmul.mubr.bf16.gmra.mrb[0].mxu0 %v490
  %v526 = vpop.f32.mrb[0].mxu0
  %v527 = vadd.f32 0.0, %v526
  %v528 = vpop.f32.mrb[0].mxu0
  %v529 = vadd.f32 0.0, %v528
  %v530 = vpop.f32.mrb[0].mxu0
  %v531 = vpop.f32.mrb[0].mxu0
  %532 = vdwg.mxu0
  %v533 = vadd.f32 %v45, %v527
  %v534 = vadd.f32 %v46, %v529
  %v535 = vtanh.pop %v533
  %v536 = vtanh.pop %v534
  %v537 = vmul.f32 %v535, 0.5
  %v538 = vadd.f32 %v537, 0.5
  %v539 = vmul.f32 %v536, 0.5
  %v540 = vadd.f32 %v539, 0.5
  %v541 = vmul.f32 %v538, %v482
  %v542 = vmul.f32 %v538, %v536
  %544 = vrot.lane.b32.xlu0 %v542, 64
  %v545 = vpop.permute.xlu0 %544
  %v547 = vadd.f32 %v541, %v545
  %v548 = vtanh.pop %v547
  %v549 = vmul.f32 %v540, %v548
  %v550 = vpack.c.bf16 %v549, %v549
  %552 = vrot.lane.b32.xlu0 %v550, 64
  %v553 = vpop.permute.xlu0 %552
  %v555 = vsel %vm98, %v553, 0
  %557 = vmatprep.subr.bf16.mxu0 %v83
  %558 = vmatpush1.bf16.msra.mxu0 %v82
  %559 = vmatprep.subr.bf16.mxu0 %v85
  %560 = vmatpush1.bf16.msra.mxu0 %v84
  %561 = vmatprep.subr.bf16.mxu0 %v87
  %562 = vmatpush1.bf16.msra.mxu0 %v86
  %563 = vmatprep.subr.bf16.mxu0 %v89
  %564 = vmatpush1.bf16.msra.mxu0 %v88
  %565 = vmatprep.subr.bf16.mxu0 0
  %566 = vmatpush1.bf16.msra.mxu0 0
  %567 = vmatprep.subr.bf16.mxu0 0
  %568 = vmatpush1.bf16.msra.mxu0 0
  %569 = vmatprep.subr.bf16.mxu0 0
  %570 = vmatpush1.bf16.msra.mxu0 0
  %571 = vmatprep.subr.bf16.mxu0 0
  %572 = vmatpush1.bf16.msra.mxu0 0
  %573 = vmatprep.subr.bf16.mxu0 0
  %574 = vmatpush1.bf16.msra.mxu0 0
  %575 = vmatprep.subr.bf16.mxu0 0
  %576 = vmatpush1.bf16.msra.mxu0 0
  %577 = vmatprep.subr.bf16.mxu0 0
  %578 = vmatpush1.bf16.msra.mxu0 0
  %579 = vmatprep.subr.bf16.mxu0 0
  %580 = vmatpush1.bf16.msra.mxu0 0
  %581 = vmatprep.subr.bf16.mxu0 0
  %582 = vmatpush1.bf16.msra.mxu0 0
  %583 = vmatprep.subr.bf16.mxu0 0
  %584 = vmatpush1.bf16.msra.mxu0 0
  %585 = vmatprep.subr.bf16.mxu0 0
  %586 = vmatpush1.bf16.msra.mxu0 0
  %587 = vmatprep.subr.bf16.mxu0 0
  %588 = vmatpush1.bf16.msra.mxu0 0
  %589 = vmatprep.mubr.bf16.mxu0 0
  %590 = vmatmul.mubr.bf16.gmra.mrb[0].mxu0 %v555
  %v591 = vpop.f32.mrb[0].mxu0
  %v592 = vadd.f32 0.0, %v591
  %v593 = vpop.f32.mrb[0].mxu0
  %v594 = vadd.f32 0.0, %v593
  %v595 = vpop.f32.mrb[0].mxu0
  %v596 = vpop.f32.mrb[0].mxu0
  %597 = vdwg.mxu0
  %v598 = vadd.f32 %v48, %v592
  %v599 = vadd.f32 %v49, %v594
  %v600 = vtanh.pop %v598
  %v601 = vtanh.pop %v599
  %v602 = vmul.f32 %v600, 0.5
  %v603 = vadd.f32 %v602, 0.5
  %v604 = vmul.f32 %v601, 0.5
  %v605 = vadd.f32 %v604, 0.5
  %v606 = vmul.f32 %v603, %v547
  %v607 = vmul.f32 %v603, %v601
  %609 = vrot.lane.b32.xlu0 %v607, 64
  %v610 = vpop.permute.xlu0 %609
  %v612 = vadd.f32 %v606, %v610
  %v613 = vtanh.pop %v612
  %v614 = vmul.f32 %v605, %v613
  %v615 = vpack.c.bf16 %v224, %v159
  %v616 = vpack.c.bf16 %v354, %v289
  %v617 = vpack.c.bf16 %v484, %v419
  %v618 = vpack.c.bf16 %v614, %v549
  %v619 = vpack.c.bf16 %v549, %v614
  %v620 = vpack.c.bf16 %v419, %v484
  %v621 = vpack.c.bf16 %v289, %v354
  %v622 = vpack.c.bf16 %v159, %v224
  %v623 = vld [vmem:[%s2] sm:$0xff]
  %v624 = vld [vmem:[%s2 + $0x8] sm:$0xff]
  %v625 = vld [vmem:[%s2 + $0x10] sm:$0xff]
  %v626 = vld [vmem:[%s2 + $0x18] sm:$0xff]
  %v627 = vld [vmem:[%s2 + $0x20] sm:$0xff]
  %v628 = vld [vmem:[%s2 + $0x28] sm:$0xff]
  %v629 = vld [vmem:[%s2 + $0x30] sm:$0xff]
  %v630 = vld [vmem:[%s2 + $0x38] sm:$0xff]
  %v631 = vld [vmem:[%s3] sm:$0xff]
  %v632 = vld [vmem:[%s3 + $0x8] sm:$0xff]
  %v633 = vld [vmem:[%s3 + $0x10] sm:$0xff]
  %v634 = vld [vmem:[%s3 + $0x18] sm:$0xff]
  %v635 = vld [vmem:[%s3 + $0x20] sm:$0xff]
  %v636 = vld [vmem:[%s3 + $0x28] sm:$0xff]
  %v637 = vld [vmem:[%s3 + $0x30] sm:$0xff]
  %v638 = vld [vmem:[%s3 + $0x38] sm:$0xff]
  %643 = vrot.lane.b32.xlu0 %v619, 64
  %v644 = vpop.permute.xlu0 %643
  %645 = vrot.lane.b32.xlu0 %v620, 64
  %v646 = vpop.permute.xlu0 %645
  %647 = vrot.lane.b32.xlu0 %v621, 64
  %v648 = vpop.permute.xlu0 %647
  %649 = vrot.lane.b32.xlu0 %v622, 64
  %v650 = vpop.permute.xlu0 %649
  %v659 = vunpack.c.l.b16 %v631
  %v660 = vunpack.c.h.b16 %v631
  %v661 = vunpack.c.l.b16 %v632
  %v662 = vunpack.c.h.b16 %v632
  %v663 = vunpack.c.l.b16 %v633
  %v664 = vunpack.c.h.b16 %v633
  %v665 = vunpack.c.l.b16 %v634
  %v666 = vunpack.c.h.b16 %v634
  %v667 = vunpack.c.l.b16 %v635
  %v668 = vunpack.c.h.b16 %v635
  %v669 = vunpack.c.l.b16 %v636
  %v670 = vunpack.c.h.b16 %v636
  %v671 = vunpack.c.l.b16 %v637
  %v672 = vunpack.c.h.b16 %v637
  %v673 = vunpack.c.l.b16 %v638
  %v674 = vunpack.c.h.b16 %v638
  %v675 = vpack.c.b16 %v661, %v659
  %v676 = vpack.c.b16 %v662, %v660
  %v677 = vpack.c.b16 %v665, %v663
  %v678 = vpack.c.b16 %v666, %v664
  %v679 = vpack.c.b16 %v669, %v667
  %v680 = vpack.c.b16 %v670, %v668
  %v681 = vpack.c.b16 %v673, %v671
  %v682 = vpack.c.b16 %v674, %v672
  %v692 = vsel %vm98, %v644, 0
  %v695 = vsel %vm98, %v646, 0
  %v698 = vsel %vm98, %v648, 0
  %v701 = vsel %vm98, %v650, 0
  %703 = vmatprep.subr.bf16.mxu0 %v676
  %704 = vmatpush1.bf16.msra.mxu0 %v675
  %705 = vmatprep.subr.bf16.mxu0 %v678
  %706 = vmatpush1.bf16.msra.mxu0 %v677
  %707 = vmatprep.subr.bf16.mxu0 %v680
  %708 = vmatpush1.bf16.msra.mxu0 %v679
  %709 = vmatprep.subr.bf16.mxu0 %v682
  %710 = vmatpush1.bf16.msra.mxu0 %v681
  %711 = vmatprep.subr.bf16.mxu0 0
  %712 = vmatpush1.bf16.msra.mxu0 0
  %713 = vmatprep.subr.bf16.mxu0 0
  %714 = vmatpush1.bf16.msra.mxu0 0
  %715 = vmatprep.subr.bf16.mxu0 0
  %716 = vmatpush1.bf16.msra.mxu0 0
  %717 = vmatprep.subr.bf16.mxu0 0
  %718 = vmatpush1.bf16.msra.mxu0 0
  %719 = vmatprep.subr.bf16.mxu0 0
  %720 = vmatpush1.bf16.msra.mxu0 0
  %721 = vmatprep.subr.bf16.mxu0 0
  %722 = vmatpush1.bf16.msra.mxu0 0
  %723 = vmatprep.subr.bf16.mxu0 0
  %724 = vmatpush1.bf16.msra.mxu0 0
  %725 = vmatprep.subr.bf16.mxu0 0
  %726 = vmatpush1.bf16.msra.mxu0 0
  %727 = vmatprep.subr.bf16.mxu0 0
  %728 = vmatpush1.bf16.msra.mxu0 0
  %729 = vmatprep.subr.bf16.mxu0 0
  %730 = vmatpush1.bf16.msra.mxu0 0
  %731 = vmatprep.subr.bf16.mxu0 0
  %732 = vmatpush1.bf16.msra.mxu0 0
  %733 = vmatprep.subr.bf16.mxu0 0
  %734 = vmatpush1.bf16.msra.mxu0 0
  %735 = vmatprep.mubr.bf16.mxu0 0
  %736 = vmatmul.mubr.bf16.gmra.mrb[0].mxu0 %v692
  %v737 = vpop.f32.mrb[0].mxu0
  %v738 = vadd.f32 0.0, %v737
  %v739 = vpop.f32.mrb[0].mxu0
  %v740 = vadd.f32 0.0, %v739
  %v741 = vpop.f32.mrb[0].mxu0
  %v742 = vadd.f32 0.0, %v741
  %v743 = vpop.f32.mrb[0].mxu0
  %v744 = vadd.f32 0.0, %v743
  %745 = vmatprep.mubr.bf16.mxu0 0
  %746 = vmatmul.mubr.bf16.gmra.mrb[0].mxu0 %v695
  %v747 = vpop.f32.mrb[0].mxu0
  %v748 = vadd.f32 0.0, %v747
  %v749 = vpop.f32.mrb[0].mxu0
  %v750 = vadd.f32 0.0, %v749
  %v751 = vpop.f32.mrb[0].mxu0
  %v752 = vadd.f32 0.0, %v751
  %v753 = vpop.f32.mrb[0].mxu0
  %v754 = vadd.f32 0.0, %v753
  %755 = vmatprep.mubr.bf16.mxu0 0
  %756 = vmatmul.mubr.bf16.gmra.mrb[0].mxu0 %v698
  %v757 = vpop.f32.mrb[0].mxu0
  %v758 = vadd.f32 0.0, %v757
  %v759 = vpop.f32.mrb[0].mxu0
  %v760 = vadd.f32 0.0, %v759
  %v761 = vpop.f32.mrb[0].mxu0
  %v762 = vadd.f32 0.0, %v761
  %v763 = vpop.f32.mrb[0].mxu0
  %v764 = vadd.f32 0.0, %v763
  %765 = vmatprep.mubr.bf16.mxu0 0
  %766 = vmatmul.mubr.bf16.gmra.mrb[0].mxu0 %v701
  %v767 = vpop.f32.mrb[0].mxu0
  %v768 = vadd.f32 0.0, %v767
  %v769 = vpop.f32.mrb[0].mxu0
  %v770 = vadd.f32 0.0, %v769
  %v771 = vpop.f32.mrb[0].mxu0
  %v772 = vadd.f32 0.0, %v771
  %v773 = vpop.f32.mrb[0].mxu0
  %v774 = vadd.f32 0.0, %v773
  %775 = vdwg.mxu0
  %780 = vrot.lane.b32.xlu0 %v615, 64
  %v781 = vpop.permute.xlu0 %780
  %782 = vrot.lane.b32.xlu0 %v616, 64
  %v783 = vpop.permute.xlu0 %782
  %784 = vrot.lane.b32.xlu0 %v617, 64
  %v785 = vpop.permute.xlu0 %784
  %786 = vrot.lane.b32.xlu0 %v618, 64
  %v787 = vpop.permute.xlu0 %786
  %v796 = vunpack.c.l.b16 %v623
  %v797 = vunpack.c.h.b16 %v623
  %v798 = vunpack.c.l.b16 %v624
  %v799 = vunpack.c.h.b16 %v624
  %v800 = vunpack.c.l.b16 %v625
  %v801 = vunpack.c.h.b16 %v625
  %v802 = vunpack.c.l.b16 %v626
  %v803 = vunpack.c.h.b16 %v626
  %v804 = vunpack.c.l.b16 %v627
  %v805 = vunpack.c.h.b16 %v627
  %v806 = vunpack.c.l.b16 %v628
  %v807 = vunpack.c.h.b16 %v628
  %v808 = vunpack.c.l.b16 %v629
  %v809 = vunpack.c.h.b16 %v629
  %v810 = vunpack.c.l.b16 %v630
  %v811 = vunpack.c.h.b16 %v630
  %v812 = vpack.c.b16 %v798, %v796
  %v813 = vpack.c.b16 %v799, %v797
  %v814 = vpack.c.b16 %v802, %v800
  %v815 = vpack.c.b16 %v803, %v801
  %v816 = vpack.c.b16 %v806, %v804
  %v817 = vpack.c.b16 %v807, %v805
  %v818 = vpack.c.b16 %v810, %v808
  %v819 = vpack.c.b16 %v811, %v809
  %v829 = vsel %vm98, %v781, 0
  %v832 = vsel %vm98, %v783, 0
  %v835 = vsel %vm98, %v785, 0
  %v838 = vsel %vm98, %v787, 0
  %840 = vmatprep.subr.bf16.mxu0 %v813
  %841 = vmatpush1.bf16.msra.mxu0 %v812
  %842 = vmatprep.subr.bf16.mxu0 %v815
  %843 = vmatpush1.bf16.msra.mxu0 %v814
  %844 = vmatprep.subr.bf16.mxu0 %v817
  %845 = vmatpush1.bf16.msra.mxu0 %v816
  %846 = vmatprep.subr.bf16.mxu0 %v819
  %847 = vmatpush1.bf16.msra.mxu0 %v818
  %848 = vmatprep.subr.bf16.mxu0 0
  %849 = vmatpush1.bf16.msra.mxu0 0
  %850 = vmatprep.subr.bf16.mxu0 0
  %851 = vmatpush1.bf16.msra.mxu0 0
  %852 = vmatprep.subr.bf16.mxu0 0
  %853 = vmatpush1.bf16.msra.mxu0 0
  %854 = vmatprep.subr.bf16.mxu0 0
  %855 = vmatpush1.bf16.msra.mxu0 0
  %856 = vmatprep.subr.bf16.mxu0 0
  %857 = vmatpush1.bf16.msra.mxu0 0
  %858 = vmatprep.subr.bf16.mxu0 0
  %859 = vmatpush1.bf16.msra.mxu0 0
  %860 = vmatprep.subr.bf16.mxu0 0
  %861 = vmatpush1.bf16.msra.mxu0 0
  %862 = vmatprep.subr.bf16.mxu0 0
  %863 = vmatpush1.bf16.msra.mxu0 0
  %864 = vmatprep.subr.bf16.mxu0 0
  %865 = vmatpush1.bf16.msra.mxu0 0
  %866 = vmatprep.subr.bf16.mxu0 0
  %867 = vmatpush1.bf16.msra.mxu0 0
  %868 = vmatprep.subr.bf16.mxu0 0
  %869 = vmatpush1.bf16.msra.mxu0 0
  %870 = vmatprep.subr.bf16.mxu0 0
  %871 = vmatpush1.bf16.msra.mxu0 0
  %872 = vmatprep.mubr.bf16.mxu0 0
  %873 = vmatmul.mubr.bf16.gmra.mrb[0].mxu0 %v829
  %v874 = vpop.f32.mrb[0].mxu0
  %v875 = vadd.f32 %v738, %v874
  %v876 = vpop.f32.mrb[0].mxu0
  %v877 = vadd.f32 %v740, %v876
  %v878 = vpop.f32.mrb[0].mxu0
  %v879 = vadd.f32 %v742, %v878
  %v880 = vpop.f32.mrb[0].mxu0
  %v881 = vadd.f32 %v744, %v880
  %882 = vmatprep.mubr.bf16.mxu0 0
  %883 = vmatmul.mubr.bf16.gmra.mrb[0].mxu0 %v832
  %v884 = vpop.f32.mrb[0].mxu0
  %v885 = vadd.f32 %v748, %v884
  %v886 = vpop.f32.mrb[0].mxu0
  %v887 = vadd.f32 %v750, %v886
  %v888 = vpop.f32.mrb[0].mxu0
  %v889 = vadd.f32 %v752, %v888
  %v890 = vpop.f32.mrb[0].mxu0
  %v891 = vadd.f32 %v754, %v890
  %892 = vmatprep.mubr.bf16.mxu0 0
  %893 = vmatmul.mubr.bf16.gmra.mrb[0].mxu0 %v835
  %v894 = vpop.f32.mrb[0].mxu0
  %v895 = vadd.f32 %v758, %v894
  %v896 = vpop.f32.mrb[0].mxu0
  %v897 = vadd.f32 %v760, %v896
  %v898 = vpop.f32.mrb[0].mxu0
  %v899 = vadd.f32 %v762, %v898
  %v900 = vpop.f32.mrb[0].mxu0
  %v901 = vadd.f32 %v764, %v900
  %902 = vmatprep.mubr.bf16.mxu0 0
  %903 = vmatmul.mubr.bf16.gmra.mrb[0].mxu0 %v838
  %v904 = vpop.f32.mrb[0].mxu0
  %v905 = vadd.f32 %v768, %v904
  %v906 = vpop.f32.mrb[0].mxu0
  %v907 = vadd.f32 %v770, %v906
  %v908 = vpop.f32.mrb[0].mxu0
  %v909 = vadd.f32 %v772, %v908
  %v910 = vpop.f32.mrb[0].mxu0
  %v911 = vadd.f32 %v774, %v910
  %912 = vdwg.mxu0
  %v913 = vld [vmem:[%s4] sm:$0x3]
  %v915 = vlaneseq
  %v916 = vshrl.u32 %v915, 7
  %v917 = vsub.s32 0, %v916
  %v918 = vrot.slane %v913, %v917
  %v919 = vlaneseq
  %v920 = vshrl.u32 %v919, 7
  %v921 = vsub.s32 1, %v920
  %v922 = vrot.slane %v913, %v921
  %v925 = vadd.f32 %v875, %v918
  %v926 = vadd.f32 %v877, %v922
  %v927 = vadd.f32 %v879, %v918
  %v928 = vadd.f32 %v881, %v922
  %v929 = vadd.f32 %v885, %v918
  %v930 = vadd.f32 %v887, %v922
  %v931 = vadd.f32 %v889, %v918
  %v932 = vadd.f32 %v891, %v922
  %v933 = vadd.f32 %v895, %v918
  %v934 = vadd.f32 %v897, %v922
  %v935 = vadd.f32 %v899, %v918
  %v936 = vadd.f32 %v901, %v922
  %v937 = vadd.f32 %v905, %v918
  %v938 = vadd.f32 %v907, %v922
  %v939 = vadd.f32 %v909, %v918
  %v940 = vadd.f32 %v911, %v922
  %s941 = scalar_lea.vmem %s1, 64
  %v942 = vld [vmem:[%s941] sm:$0xff]
  %v943 = vld [vmem:[%s941 + $0x8] sm:$0xff]
  %v944 = vld [vmem:[%s941 + $0x10] sm:$0xff]
  %v945 = vld [vmem:[%s941 + $0x18] sm:$0xff]
  %v946 = vld [vmem:[%s941 + $0x20] sm:$0xff]
  %v947 = vld [vmem:[%s941 + $0x28] sm:$0xff]
  %v948 = vld [vmem:[%s941 + $0x30] sm:$0xff]
  %v949 = vld [vmem:[%s941 + $0x38] sm:$0xff]
  %v958 = vunpack.c.l.b16 %v942
  %v959 = vunpack.c.h.b16 %v942
  %v960 = vunpack.c.l.b16 %v943
  %v961 = vunpack.c.h.b16 %v943
  %v962 = vunpack.c.l.b16 %v944
  %v963 = vunpack.c.h.b16 %v944
  %v964 = vunpack.c.l.b16 %v945
  %v965 = vunpack.c.h.b16 %v945
  %v966 = vunpack.c.l.b16 %v946
  %v967 = vunpack.c.h.b16 %v946
  %v968 = vunpack.c.l.b16 %v947
  %v969 = vunpack.c.h.b16 %v947
  %v970 = vunpack.c.l.b16 %v948
  %v971 = vunpack.c.h.b16 %v948
  %v972 = vunpack.c.l.b16 %v949
  %v973 = vunpack.c.h.b16 %v949
  %v974 = vpack.c.b16 %v960, %v958
  %v975 = vpack.c.b16 %v961, %v959
  %v976 = vpack.c.b16 %v964, %v962
  %v977 = vpack.c.b16 %v965, %v963
  %v978 = vpack.c.b16 %v968, %v966
  %v979 = vpack.c.b16 %v969, %v967
  %v980 = vpack.c.b16 %v972, %v970
  %v981 = vpack.c.b16 %v973, %v971
  %990 = vmatprep.subr.bf16.mxu0 %v975
  %991 = vmatpush1.bf16.msra.mxu0 %v974
  %992 = vmatprep.subr.bf16.mxu0 %v977
  %993 = vmatpush1.bf16.msra.mxu0 %v976
  %994 = vmatprep.subr.bf16.mxu0 %v979
  %995 = vmatpush1.bf16.msra.mxu0 %v978
  %996 = vmatprep.subr.bf16.mxu0 %v981
  %997 = vmatpush1.bf16.msra.mxu0 %v980
  %998 = vmatprep.subr.bf16.mxu0 0
  %999 = vmatpush1.bf16.msra.mxu0 0
  %1000 = vmatprep.subr.bf16.mxu0 0
  %1001 = vmatpush1.bf16.msra.mxu0 0
  %1002 = vmatprep.subr.bf16.mxu0 0
  %1003 = vmatpush1.bf16.msra.mxu0 0
  %1004 = vmatprep.subr.bf16.mxu0 0
  %1005 = vmatpush1.bf16.msra.mxu0 0
  %1006 = vmatprep.subr.bf16.mxu0 0
  %1007 = vmatpush1.bf16.msra.mxu0 0
  %1008 = vmatprep.subr.bf16.mxu0 0
  %1009 = vmatpush1.bf16.msra.mxu0 0
  %1010 = vmatprep.subr.bf16.mxu0 0
  %1011 = vmatpush1.bf16.msra.mxu0 0
  %1012 = vmatprep.subr.bf16.mxu0 0
  %1013 = vmatpush1.bf16.msra.mxu0 0
  %1014 = vmatprep.subr.bf16.mxu0 0
  %1015 = vmatpush1.bf16.msra.mxu0 0
  %1016 = vmatprep.subr.bf16.mxu0 0
  %1017 = vmatpush1.bf16.msra.mxu0 0
  %1018 = vmatprep.subr.bf16.mxu0 0
  %1019 = vmatpush1.bf16.msra.mxu0 0
  %1020 = vmatprep.subr.bf16.mxu0 0
  %1021 = vmatpush1.bf16.msra.mxu0 0
  %1022 = vmatprep.mubr.bf16.mxu0 0
  %1023 = vmatmul.mubr.bf16.gmra.mrb[0].mxu0 %v100
  %v1024 = vpop.f32.mrb[0].mxu0
  %v1025 = vadd.f32 0.0, %v1024
  %v1026 = vpop.f32.mrb[0].mxu0
  %v1027 = vadd.f32 0.0, %v1026
  %v1028 = vpop.f32.mrb[0].mxu0
  %v1029 = vpop.f32.mrb[0].mxu0
  %1030 = vdwg.mxu0
  %v1031 = vadd.f32 %v925, %v1025
  %v1032 = vadd.f32 %v926, %v1027
  %v1033 = vtanh.pop %v1031
  %v1034 = vtanh.pop %v1032
  %v1035 = vmul.f32 %v1033, 0.5
  %v1036 = vadd.f32 %v1035, 0.5
  %v1037 = vmul.f32 %v1034, 0.5
  %v1038 = vadd.f32 %v1037, 0.5
  %v1039 = vmul.f32 %v1036, 0.0
  %v1040 = vmul.f32 %v1036, %v1034
  %1042 = vrot.lane.b32.xlu0 %v1040, 64
  %v1043 = vpop.permute.xlu0 %1042
  %v1045 = vadd.f32 %v1039, %v1043
  %v1046 = vtanh.pop %v1045
  %v1047 = vmul.f32 %v1038, %v1046
  %v1048 = vpack.c.bf16 %v1047, %v1047
  %1050 = vrot.lane.b32.xlu0 %v1048, 64
  %v1051 = vpop.permute.xlu0 %1050
  %v1053 = vsel %vm98, %v1051, 0
  %1055 = vmatprep.subr.bf16.mxu0 %v975
  %1056 = vmatpush1.bf16.msra.mxu0 %v974
  %1057 = vmatprep.subr.bf16.mxu0 %v977
  %1058 = vmatpush1.bf16.msra.mxu0 %v976
  %1059 = vmatprep.subr.bf16.mxu0 %v979
  %1060 = vmatpush1.bf16.msra.mxu0 %v978
  %1061 = vmatprep.subr.bf16.mxu0 %v981
  %1062 = vmatpush1.bf16.msra.mxu0 %v980
  %1063 = vmatprep.subr.bf16.mxu0 0
  %1064 = vmatpush1.bf16.msra.mxu0 0
  %1065 = vmatprep.subr.bf16.mxu0 0
  %1066 = vmatpush1.bf16.msra.mxu0 0
  %1067 = vmatprep.subr.bf16.mxu0 0
  %1068 = vmatpush1.bf16.msra.mxu0 0
  %1069 = vmatprep.subr.bf16.mxu0 0
  %1070 = vmatpush1.bf16.msra.mxu0 0
  %1071 = vmatprep.subr.bf16.mxu0 0
  %1072 = vmatpush1.bf16.msra.mxu0 0
  %1073 = vmatprep.subr.bf16.mxu0 0
  %1074 = vmatpush1.bf16.msra.mxu0 0
  %1075 = vmatprep.subr.bf16.mxu0 0
  %1076 = vmatpush1.bf16.msra.mxu0 0
  %1077 = vmatprep.subr.bf16.mxu0 0
  %1078 = vmatpush1.bf16.msra.mxu0 0
  %1079 = vmatprep.subr.bf16.mxu0 0
  %1080 = vmatpush1.bf16.msra.mxu0 0
  %1081 = vmatprep.subr.bf16.mxu0 0
  %1082 = vmatpush1.bf16.msra.mxu0 0
  %1083 = vmatprep.subr.bf16.mxu0 0
  %1084 = vmatpush1.bf16.msra.mxu0 0
  %1085 = vmatprep.subr.bf16.mxu0 0
  %1086 = vmatpush1.bf16.msra.mxu0 0
  %1087 = vmatprep.mubr.bf16.mxu0 0
  %1088 = vmatmul.mubr.bf16.gmra.mrb[0].mxu0 %v1053
  %v1089 = vpop.f32.mrb[0].mxu0
  %v1090 = vadd.f32 0.0, %v1089
  %v1091 = vpop.f32.mrb[0].mxu0
  %v1092 = vadd.f32 0.0, %v1091
  %v1093 = vpop.f32.mrb[0].mxu0
  %v1094 = vpop.f32.mrb[0].mxu0
  %1095 = vdwg.mxu0
  %v1096 = vadd.f32 %v927, %v1090
  %v1097 = vadd.f32 %v928, %v1092
  %v1098 = vtanh.pop %v1096
  %v1099 = vtanh.pop %v1097
  %v1100 = vmul.f32 %v1098, 0.5
  %v1101 = vadd.f32 %v1100, 0.5
  %v1102 = vmul.f32 %v1099, 0.5
  %v1103 = vadd.f32 %v1102, 0.5
  %v1104 = vmul.f32 %v1101, %v1045
  %v1105 = vmul.f32 %v1101, %v1099
  %1107 = vrot.lane.b32.xlu0 %v1105, 64
  %v1108 = vpop.permute.xlu0 %1107
  %v1110 = vadd.f32 %v1104, %v1108
  %v1111 = vtanh.pop %v1110
  %v1112 = vmul.f32 %v1103, %v1111
  %v1113 = vpack.c.bf16 %v1112, %v1112
  %1115 = vrot.lane.b32.xlu0 %v1113, 64
  %v1116 = vpop.permute.xlu0 %1115
  %v1118 = vsel %vm98, %v1116, 0
  %1120 = vmatprep.subr.bf16.mxu0 %v975
  %1121 = vmatpush1.bf16.msra.mxu0 %v974
  %1122 = vmatprep.subr.bf16.mxu0 %v977
  %1123 = vmatpush1.bf16.msra.mxu0 %v976
  %1124 = vmatprep.subr.bf16.mxu0 %v979
  %1125 = vmatpush1.bf16.msra.mxu0 %v978
  %1126 = vmatprep.subr.bf16.mxu0 %v981
  %1127 = vmatpush1.bf16.msra.mxu0 %v980
  %1128 = vmatprep.subr.bf16.mxu0 0
  %1129 = vmatpush1.bf16.msra.mxu0 0
  %1130 = vmatprep.subr.bf16.mxu0 0
  %1131 = vmatpush1.bf16.msra.mxu0 0
  %1132 = vmatprep.subr.bf16.mxu0 0
  %1133 = vmatpush1.bf16.msra.mxu0 0
  %1134 = vmatprep.subr.bf16.mxu0 0
  %1135 = vmatpush1.bf16.msra.mxu0 0
  %1136 = vmatprep.subr.bf16.mxu0 0
  %1137 = vmatpush1.bf16.msra.mxu0 0
  %1138 = vmatprep.subr.bf16.mxu0 0
  %1139 = vmatpush1.bf16.msra.mxu0 0
  %1140 = vmatprep.subr.bf16.mxu0 0
  %1141 = vmatpush1.bf16.msra.mxu0 0
  %1142 = vmatprep.subr.bf16.mxu0 0
  %1143 = vmatpush1.bf16.msra.mxu0 0
  %1144 = vmatprep.subr.bf16.mxu0 0
  %1145 = vmatpush1.bf16.msra.mxu0 0
  %1146 = vmatprep.subr.bf16.mxu0 0
  %1147 = vmatpush1.bf16.msra.mxu0 0
  %1148 = vmatprep.subr.bf16.mxu0 0
  %1149 = vmatpush1.bf16.msra.mxu0 0
  %1150 = vmatprep.subr.bf16.mxu0 0
  %1151 = vmatpush1.bf16.msra.mxu0 0
  %1152 = vmatprep.mubr.bf16.mxu0 0
  %1153 = vmatmul.mubr.bf16.gmra.mrb[0].mxu0 %v1118
  %v1154 = vpop.f32.mrb[0].mxu0
  %v1155 = vadd.f32 0.0, %v1154
  %v1156 = vpop.f32.mrb[0].mxu0
  %v1157 = vadd.f32 0.0, %v1156
  %v1158 = vpop.f32.mrb[0].mxu0
  %v1159 = vpop.f32.mrb[0].mxu0
  %1160 = vdwg.mxu0
  %v1161 = vadd.f32 %v929, %v1155
  %v1162 = vadd.f32 %v930, %v1157
  %v1163 = vtanh.pop %v1161
  %v1164 = vtanh.pop %v1162
  %v1165 = vmul.f32 %v1163, 0.5
  %v1166 = vadd.f32 %v1165, 0.5
  %v1167 = vmul.f32 %v1164, 0.5
  %v1168 = vadd.f32 %v1167, 0.5
  %v1169 = vmul.f32 %v1166, %v1110
  %v1170 = vmul.f32 %v1166, %v1164
  %1172 = vrot.lane.b32.xlu0 %v1170, 64
  %v1173 = vpop.permute.xlu0 %1172
  %v1175 = vadd.f32 %v1169, %v1173
  %v1176 = vtanh.pop %v1175
  %v1177 = vmul.f32 %v1168, %v1176
  %v1178 = vpack.c.bf16 %v1177, %v1177
  %1180 = vrot.lane.b32.xlu0 %v1178, 64
  %v1181 = vpop.permute.xlu0 %1180
  %v1183 = vsel %vm98, %v1181, 0
  %1185 = vmatprep.subr.bf16.mxu0 %v975
  %1186 = vmatpush1.bf16.msra.mxu0 %v974
  %1187 = vmatprep.subr.bf16.mxu0 %v977
  %1188 = vmatpush1.bf16.msra.mxu0 %v976
  %1189 = vmatprep.subr.bf16.mxu0 %v979
  %1190 = vmatpush1.bf16.msra.mxu0 %v978
  %1191 = vmatprep.subr.bf16.mxu0 %v981
  %1192 = vmatpush1.bf16.msra.mxu0 %v980
  %1193 = vmatprep.subr.bf16.mxu0 0
  %1194 = vmatpush1.bf16.msra.mxu0 0
  %1195 = vmatprep.subr.bf16.mxu0 0
  %1196 = vmatpush1.bf16.msra.mxu0 0
  %1197 = vmatprep.subr.bf16.mxu0 0
  %1198 = vmatpush1.bf16.msra.mxu0 0
  %1199 = vmatprep.subr.bf16.mxu0 0
  %1200 = vmatpush1.bf16.msra.mxu0 0
  %1201 = vmatprep.subr.bf16.mxu0 0
  %1202 = vmatpush1.bf16.msra.mxu0 0
  %1203 = vmatprep.subr.bf16.mxu0 0
  %1204 = vmatpush1.bf16.msra.mxu0 0
  %1205 = vmatprep.subr.bf16.mxu0 0
  %1206 = vmatpush1.bf16.msra.mxu0 0
  %1207 = vmatprep.subr.bf16.mxu0 0
  %1208 = vmatpush1.bf16.msra.mxu0 0
  %1209 = vmatprep.subr.bf16.mxu0 0
  %1210 = vmatpush1.bf16.msra.mxu0 0
  %1211 = vmatprep.subr.bf16.mxu0 0
  %1212 = vmatpush1.bf16.msra.mxu0 0
  %1213 = vmatprep.subr.bf16.mxu0 0
  %1214 = vmatpush1.bf16.msra.mxu0 0
  %1215 = vmatprep.subr.bf16.mxu0 0
  %1216 = vmatpush1.bf16.msra.mxu0 0
  %1217 = vmatprep.mubr.bf16.mxu0 0
  %1218 = vmatmul.mubr.bf16.gmra.mrb[0].mxu0 %v1183
  %v1219 = vpop.f32.mrb[0].mxu0
  %v1220 = vadd.f32 0.0, %v1219
  %v1221 = vpop.f32.mrb[0].mxu0
  %v1222 = vadd.f32 0.0, %v1221
  %v1223 = vpop.f32.mrb[0].mxu0
  %v1224 = vpop.f32.mrb[0].mxu0
  %1225 = vdwg.mxu0
  %v1226 = vadd.f32 %v931, %v1220
  %v1227 = vadd.f32 %v932, %v1222
  %v1228 = vtanh.pop %v1226
  %v1229 = vtanh.pop %v1227
  %v1230 = vmul.f32 %v1228, 0.5
  %v1231 = vadd.f32 %v1230, 0.5
  %v1232 = vmul.f32 %v1229, 0.5
  %v1233 = vadd.f32 %v1232, 0.5
  %v1234 = vmul.f32 %v1231, %v1175
  %v1235 = vmul.f32 %v1231, %v1229
  %1237 = vrot.lane.b32.xlu0 %v1235, 64
  %v1238 = vpop.permute.xlu0 %1237
  %v1240 = vadd.f32 %v1234, %v1238
  %v1241 = vtanh.pop %v1240
  %v1242 = vmul.f32 %v1233, %v1241
  %v1243 = vpack.c.bf16 %v1242, %v1242
  %1245 = vrot.lane.b32.xlu0 %v1243, 64
  %v1246 = vpop.permute.xlu0 %1245
  %v1248 = vsel %vm98, %v1246, 0
  %1250 = vmatprep.subr.bf16.mxu0 %v975
  %1251 = vmatpush1.bf16.msra.mxu0 %v974
  %1252 = vmatprep.subr.bf16.mxu0 %v977
  %1253 = vmatpush1.bf16.msra.mxu0 %v976
  %1254 = vmatprep.subr.bf16.mxu0 %v979
  %1255 = vmatpush1.bf16.msra.mxu0 %v978
  %1256 = vmatprep.subr.bf16.mxu0 %v981
  %1257 = vmatpush1.bf16.msra.mxu0 %v980
  %1258 = vmatprep.subr.bf16.mxu0 0
  %1259 = vmatpush1.bf16.msra.mxu0 0
  %1260 = vmatprep.subr.bf16.mxu0 0
  %1261 = vmatpush1.bf16.msra.mxu0 0
  %1262 = vmatprep.subr.bf16.mxu0 0
  %1263 = vmatpush1.bf16.msra.mxu0 0
  %1264 = vmatprep.subr.bf16.mxu0 0
  %1265 = vmatpush1.bf16.msra.mxu0 0
  %1266 = vmatprep.subr.bf16.mxu0 0
  %1267 = vmatpush1.bf16.msra.mxu0 0
  %1268 = vmatprep.subr.bf16.mxu0 0
  %1269 = vmatpush1.bf16.msra.mxu0 0
  %1270 = vmatprep.subr.bf16.mxu0 0
  %1271 = vmatpush1.bf16.msra.mxu0 0
  %1272 = vmatprep.subr.bf16.mxu0 0
  %1273 = vmatpush1.bf16.msra.mxu0 0
  %1274 = vmatprep.subr.bf16.mxu0 0
  %1275 = vmatpush1.bf16.msra.mxu0 0
  %1276 = vmatprep.subr.bf16.mxu0 0
  %1277 = vmatpush1.bf16.msra.mxu0 0
  %1278 = vmatprep.subr.bf16.mxu0 0
  %1279 = vmatpush1.bf16.msra.mxu0 0
  %1280 = vmatprep.subr.bf16.mxu0 0
  %1281 = vmatpush1.bf16.msra.mxu0 0
  %1282 = vmatprep.mubr.bf16.mxu0 0
  %1283 = vmatmul.mubr.bf16.gmra.mrb[0].mxu0 %v1248
  %v1284 = vpop.f32.mrb[0].mxu0
  %v1285 = vadd.f32 0.0, %v1284
  %v1286 = vpop.f32.mrb[0].mxu0
  %v1287 = vadd.f32 0.0, %v1286
  %v1288 = vpop.f32.mrb[0].mxu0
  %v1289 = vpop.f32.mrb[0].mxu0
  %1290 = vdwg.mxu0
  %v1291 = vadd.f32 %v933, %v1285
  %v1292 = vadd.f32 %v934, %v1287
  %v1293 = vtanh.pop %v1291
  %v1294 = vtanh.pop %v1292
  %v1295 = vmul.f32 %v1293, 0.5
  %v1296 = vadd.f32 %v1295, 0.5
  %v1297 = vmul.f32 %v1294, 0.5
  %v1298 = vadd.f32 %v1297, 0.5
  %v1299 = vmul.f32 %v1296, %v1240
  %v1300 = vmul.f32 %v1296, %v1294
  %1302 = vrot.lane.b32.xlu0 %v1300, 64
  %v1303 = vpop.permute.xlu0 %1302
  %v1305 = vadd.f32 %v1299, %v1303
  %v1306 = vtanh.pop %v1305
  %v1307 = vmul.f32 %v1298, %v1306
  %v1308 = vpack.c.bf16 %v1307, %v1307
  %1310 = vrot.lane.b32.xlu0 %v1308, 64
  %v1311 = vpop.permute.xlu0 %1310
  %v1313 = vsel %vm98, %v1311, 0
  %1315 = vmatprep.subr.bf16.mxu0 %v975
  %1316 = vmatpush1.bf16.msra.mxu0 %v974
  %1317 = vmatprep.subr.bf16.mxu0 %v977
  %1318 = vmatpush1.bf16.msra.mxu0 %v976
  %1319 = vmatprep.subr.bf16.mxu0 %v979
  %1320 = vmatpush1.bf16.msra.mxu0 %v978
  %1321 = vmatprep.subr.bf16.mxu0 %v981
  %1322 = vmatpush1.bf16.msra.mxu0 %v980
  %1323 = vmatprep.subr.bf16.mxu0 0
  %1324 = vmatpush1.bf16.msra.mxu0 0
  %1325 = vmatprep.subr.bf16.mxu0 0
  %1326 = vmatpush1.bf16.msra.mxu0 0
  %1327 = vmatprep.subr.bf16.mxu0 0
  %1328 = vmatpush1.bf16.msra.mxu0 0
  %1329 = vmatprep.subr.bf16.mxu0 0
  %1330 = vmatpush1.bf16.msra.mxu0 0
  %1331 = vmatprep.subr.bf16.mxu0 0
  %1332 = vmatpush1.bf16.msra.mxu0 0
  %1333 = vmatprep.subr.bf16.mxu0 0
  %1334 = vmatpush1.bf16.msra.mxu0 0
  %1335 = vmatprep.subr.bf16.mxu0 0
  %1336 = vmatpush1.bf16.msra.mxu0 0
  %1337 = vmatprep.subr.bf16.mxu0 0
  %1338 = vmatpush1.bf16.msra.mxu0 0
  %1339 = vmatprep.subr.bf16.mxu0 0
  %1340 = vmatpush1.bf16.msra.mxu0 0
  %1341 = vmatprep.subr.bf16.mxu0 0
  %1342 = vmatpush1.bf16.msra.mxu0 0
  %1343 = vmatprep.subr.bf16.mxu0 0
  %1344 = vmatpush1.bf16.msra.mxu0 0
  %1345 = vmatprep.subr.bf16.mxu0 0
  %1346 = vmatpush1.bf16.msra.mxu0 0
  %1347 = vmatprep.mubr.bf16.mxu0 0
  %1348 = vmatmul.mubr.bf16.gmra.mrb[0].mxu0 %v1313
  %v1349 = vpop.f32.mrb[0].mxu0
  %v1350 = vadd.f32 0.0, %v1349
  %v1351 = vpop.f32.mrb[0].mxu0
  %v1352 = vadd.f32 0.0, %v1351
  %v1353 = vpop.f32.mrb[0].mxu0
  %v1354 = vpop.f32.mrb[0].mxu0
  %1355 = vdwg.mxu0
  %v1356 = vadd.f32 %v935, %v1350
  %v1357 = vadd.f32 %v936, %v1352
  %v1358 = vtanh.pop %v1356
  %v1359 = vtanh.pop %v1357
  %v1360 = vmul.f32 %v1358, 0.5
  %v1361 = vadd.f32 %v1360, 0.5
  %v1362 = vmul.f32 %v1359, 0.5
  %v1363 = vadd.f32 %v1362, 0.5
  %v1364 = vmul.f32 %v1361, %v1305
  %v1365 = vmul.f32 %v1361, %v1359
  %1367 = vrot.lane.b32.xlu0 %v1365, 64
  %v1368 = vpop.permute.xlu0 %1367
  %v1370 = vadd.f32 %v1364, %v1368
  %v1371 = vtanh.pop %v1370
  %v1372 = vmul.f32 %v1363, %v1371
  %v1373 = vpack.c.bf16 %v1372, %v1372
  %1375 = vrot.lane.b32.xlu0 %v1373, 64
  %v1376 = vpop.permute.xlu0 %1375
  %v1378 = vsel %vm98, %v1376, 0
  %1380 = vmatprep.subr.bf16.mxu0 %v975
  %1381 = vmatpush1.bf16.msra.mxu0 %v974
  %1382 = vmatprep.subr.bf16.mxu0 %v977
  %1383 = vmatpush1.bf16.msra.mxu0 %v976
  %1384 = vmatprep.subr.bf16.mxu0 %v979
  %1385 = vmatpush1.bf16.msra.mxu0 %v978
  %1386 = vmatprep.subr.bf16.mxu0 %v981
  %1387 = vmatpush1.bf16.msra.mxu0 %v980
  %1388 = vmatprep.subr.bf16.mxu0 0
  %1389 = vmatpush1.bf16.msra.mxu0 0
  %1390 = vmatprep.subr.bf16.mxu0 0
  %1391 = vmatpush1.bf16.msra.mxu0 0
  %1392 = vmatprep.subr.bf16.mxu0 0
  %1393 = vmatpush1.bf16.msra.mxu0 0
  %1394 = vmatprep.subr.bf16.mxu0 0
  %1395 = vmatpush1.bf16.msra.mxu0 0
  %1396 = vmatprep.subr.bf16.mxu0 0
  %1397 = vmatpush1.bf16.msra.mxu0 0
  %1398 = vmatprep.subr.bf16.mxu0 0
  %1399 = vmatpush1.bf16.msra.mxu0 0
  %1400 = vmatprep.subr.bf16.mxu0 0
  %1401 = vmatpush1.bf16.msra.mxu0 0
  %1402 = vmatprep.subr.bf16.mxu0 0
  %1403 = vmatpush1.bf16.msra.mxu0 0
  %1404 = vmatprep.subr.bf16.mxu0 0
  %1405 = vmatpush1.bf16.msra.mxu0 0
  %1406 = vmatprep.subr.bf16.mxu0 0
  %1407 = vmatpush1.bf16.msra.mxu0 0
  %1408 = vmatprep.subr.bf16.mxu0 0
  %1409 = vmatpush1.bf16.msra.mxu0 0
  %1410 = vmatprep.subr.bf16.mxu0 0
  %1411 = vmatpush1.bf16.msra.mxu0 0
  %1412 = vmatprep.mubr.bf16.mxu0 0
  %1413 = vmatmul.mubr.bf16.gmra.mrb[0].mxu0 %v1378
  %v1414 = vpop.f32.mrb[0].mxu0
  %v1415 = vadd.f32 0.0, %v1414
  %v1416 = vpop.f32.mrb[0].mxu0
  %v1417 = vadd.f32 0.0, %v1416
  %v1418 = vpop.f32.mrb[0].mxu0
  %v1419 = vpop.f32.mrb[0].mxu0
  %1420 = vdwg.mxu0
  %v1421 = vadd.f32 %v937, %v1415
  %v1422 = vadd.f32 %v938, %v1417
  %v1423 = vtanh.pop %v1421
  %v1424 = vtanh.pop %v1422
  %v1425 = vmul.f32 %v1423, 0.5
  %v1426 = vadd.f32 %v1425, 0.5
  %v1427 = vmul.f32 %v1424, 0.5
  %v1428 = vadd.f32 %v1427, 0.5
  %v1429 = vmul.f32 %v1426, %v1370
  %v1430 = vmul.f32 %v1426, %v1424
  %1432 = vrot.lane.b32.xlu0 %v1430, 64
  %v1433 = vpop.permute.xlu0 %1432
  %v1435 = vadd.f32 %v1429, %v1433
  %v1436 = vtanh.pop %v1435
  %v1437 = vmul.f32 %v1428, %v1436
  %v1438 = vpack.c.bf16 %v1437, %v1437
  %1440 = vrot.lane.b32.xlu0 %v1438, 64
  %v1441 = vpop.permute.xlu0 %1440
  %v1443 = vsel %vm98, %v1441, 0
  %1445 = vmatprep.subr.bf16.mxu0 %v975
  %1446 = vmatpush1.bf16.msra.mxu0 %v974
  %1447 = vmatprep.subr.bf16.mxu0 %v977
  %1448 = vmatpush1.bf16.msra.mxu0 %v976
  %1449 = vmatprep.subr.bf16.mxu0 %v979
  %1450 = vmatpush1.bf16.msra.mxu0 %v978
  %1451 = vmatprep.subr.bf16.mxu0 %v981
  %1452 = vmatpush1.bf16.msra.mxu0 %v980
  %1453 = vmatprep.subr.bf16.mxu0 0
  %1454 = vmatpush1.bf16.msra.mxu0 0
  %1455 = vmatprep.subr.bf16.mxu0 0
  %1456 = vmatpush1.bf16.msra.mxu0 0
  %1457 = vmatprep.subr.bf16.mxu0 0
  %1458 = vmatpush1.bf16.msra.mxu0 0
  %1459 = vmatprep.subr.bf16.mxu0 0
  %1460 = vmatpush1.bf16.msra.mxu0 0
  %1461 = vmatprep.subr.bf16.mxu0 0
  %1462 = vmatpush1.bf16.msra.mxu0 0
  %1463 = vmatprep.subr.bf16.mxu0 0
  %1464 = vmatpush1.bf16.msra.mxu0 0
  %1465 = vmatprep.subr.bf16.mxu0 0
  %1466 = vmatpush1.bf16.msra.mxu0 0
  %1467 = vmatprep.subr.bf16.mxu0 0
  %1468 = vmatpush1.bf16.msra.mxu0 0
  %1469 = vmatprep.subr.bf16.mxu0 0
  %1470 = vmatpush1.bf16.msra.mxu0 0
  %1471 = vmatprep.subr.bf16.mxu0 0
  %1472 = vmatpush1.bf16.msra.mxu0 0
  %1473 = vmatprep.subr.bf16.mxu0 0
  %1474 = vmatpush1.bf16.msra.mxu0 0
  %1475 = vmatprep.subr.bf16.mxu0 0
  %1476 = vmatpush1.bf16.msra.mxu0 0
  %1477 = vmatprep.mubr.bf16.mxu0 0
  %1478 = vmatmul.mubr.bf16.gmra.mrb[0].mxu0 %v1443
  %v1479 = vpop.f32.mrb[0].mxu0
  %v1480 = vadd.f32 0.0, %v1479
  %v1481 = vpop.f32.mrb[0].mxu0
  %v1482 = vadd.f32 0.0, %v1481
  %v1483 = vpop.f32.mrb[0].mxu0
  %v1484 = vpop.f32.mrb[0].mxu0
  %1485 = vdwg.mxu0
  %v1486 = vadd.f32 %v939, %v1480
  %v1487 = vadd.f32 %v940, %v1482
  %v1488 = vtanh.pop %v1486
  %v1489 = vtanh.pop %v1487
  %v1490 = vmul.f32 %v1488, 0.5
  %v1491 = vadd.f32 %v1490, 0.5
  %v1492 = vmul.f32 %v1489, 0.5
  %v1493 = vadd.f32 %v1492, 0.5
  %v1494 = vmul.f32 %v1491, %v1435
  %v1495 = vmul.f32 %v1491, %v1489
  %1497 = vrot.lane.b32.xlu0 %v1495, 64
  %v1498 = vpop.permute.xlu0 %1497
  %v1500 = vadd.f32 %v1494, %v1498
  %v1501 = vtanh.pop %v1500
  %v1502 = vmul.f32 %v1493, %v1501
  %v1503 = vld [vmem:[%s5] sm:$0xff]
  %v1504 = vld [vmem:[%s5 + $0x8] sm:$0xff]
  %v1505 = vld [vmem:[%s5 + $0x10] sm:$0xff]
  %v1506 = vld [vmem:[%s5 + $0x18] sm:$0xff]
  %v1507 = vld [vmem:[%s5 + $0x20] sm:$0xff]
  %v1508 = vld [vmem:[%s5 + $0x28] sm:$0xff]
  %v1509 = vld [vmem:[%s5 + $0x30] sm:$0xff]
  %v1510 = vld [vmem:[%s5 + $0x38] sm:$0xff]
  %1512 = vrot.lane.b32.xlu0 %v1047, 32
  %v1513 = vpop.permute.xlu0 %1512
  %vm1514 = vcmask 261120
  %v1515 = vsel %vm1514, %v1513, 0
  %1517 = vmatprep.subr.mxu0 0.0
  %1518 = vmatpush1.msra.mxu0 %v1507
  %1519 = vmatprep.subr.mxu0 0.0
  %1520 = vmatpush1.msra.mxu0 %v1508
  %1521 = vmatprep.subr.mxu0 0.0
  %1522 = vmatpush1.msra.mxu0 %v1509
  %1523 = vmatprep.subr.mxu0 0.0
  %1524 = vmatpush1.msra.mxu0 %v1510
  %1525 = vmatprep.subr.mxu0 0.0
  %1526 = vmatpush1.msra.mxu0 0.0
  %1527 = vmatprep.subr.mxu0 0.0
  %1528 = vmatpush1.msra.mxu0 0.0
  %1529 = vmatprep.subr.mxu0 0.0
  %1530 = vmatpush1.msra.mxu0 0.0
  %1531 = vmatprep.subr.mxu0 0.0
  %1532 = vmatpush1.msra.mxu0 0.0
  %1533 = vmatprep.subr.mxu0 0.0
  %1534 = vmatpush1.msra.mxu0 0.0
  %1535 = vmatprep.subr.mxu0 0.0
  %1536 = vmatpush1.msra.mxu0 0.0
  %1537 = vmatprep.subr.mxu0 0.0
  %1538 = vmatpush1.msra.mxu0 0.0
  %1539 = vmatprep.subr.mxu0 0.0
  %1540 = vmatpush1.msra.mxu0 0.0
  %1541 = vmatprep.subr.mxu0 0.0
  %1542 = vmatpush1.msra.mxu0 0.0
  %1543 = vmatprep.subr.mxu0 0.0
  %1544 = vmatpush1.msra.mxu0 0.0
  %1545 = vmatprep.subr.mxu0 0.0
  %1546 = vmatpush1.msra.mxu0 0.0
  %1547 = vmatprep.subr.mxu0 0.0
  %1548 = vmatpush1.msra.mxu0 0.0
  %1549 = vmatprep.subr.mxu0 0.0
  %1550 = vmatpush1.msra.mxu0 0.0
  %1551 = vmatprep.subr.mxu0 0.0
  %1552 = vmatpush1.msra.mxu0 0.0
  %1553 = vmatprep.subr.mxu0 0.0
  %1554 = vmatpush1.msra.mxu0 0.0
  %1555 = vmatprep.subr.mxu0 0.0
  %1556 = vmatpush1.msra.mxu0 0.0
  %1557 = vmatprep.subr.mxu0 0.0
  %1558 = vmatpush1.msra.mxu0 0.0
  %1559 = vmatprep.subr.mxu0 0.0
  %1560 = vmatpush1.msra.mxu0 0.0
  %1561 = vmatprep.subr.mxu0 0.0
  %1562 = vmatpush1.msra.mxu0 0.0
  %1563 = vmatprep.subr.mxu0 0.0
  %1564 = vmatpush1.msra.mxu0 0.0
  %1565 = vmatprep.subr.mxu0 0.0
  %1566 = vmatpush1.msra.mxu0 0.0
  %1567 = vmatprep.subr.mxu0 0.0
  %1568 = vmatpush1.msra.mxu0 0.0
  %1569 = vmatprep.subr.mxu0 0.0
  %1570 = vmatpush1.msra.mxu0 0.0
  %1571 = vmatprep.subr.mxu0 0.0
  %1572 = vmatpush1.msra.mxu0 0.0
  %1573 = vmatprep.subr.mxu0 0.0
  %1574 = vmatpush1.msra.mxu0 0.0
  %1575 = vmatprep.subr.mxu0 0.0
  %1576 = vmatpush1.msra.mxu0 0.0
  %1577 = vmatprep.subr.mxu0 0.0
  %1578 = vmatpush1.msra.mxu0 0.0
  %1579 = vmatprep.subr.mxu0 0.0
  %1580 = vmatpush1.msra.mxu0 0.0
  %1581 = vmatprep.mubr.f32.mxu0 0.0
  %1582 = vmatmul.mubr.f32.gmra.mrb[0].mxu0 %v1515
  %v1583 = vpop.f32.mrb[0].mxu0
  %v1584 = vadd.f32 0.0, %v1583
  %v1585 = vpop.f32.mrb[0].mxu0
  %1586 = vdwg.mxu0
  %1588 = vrot.lane.b32.xlu0 %v1502, 64
  %v1589 = vpop.permute.xlu0 %1588
  %v1590 = vsel %vm1514, %v1589, 0
  %1592 = vmatprep.subr.mxu0 0.0
  %1593 = vmatpush1.msra.mxu0 %v1503
  %1594 = vmatprep.subr.mxu0 0.0
  %1595 = vmatpush1.msra.mxu0 %v1504
  %1596 = vmatprep.subr.mxu0 0.0
  %1597 = vmatpush1.msra.mxu0 %v1505
  %1598 = vmatprep.subr.mxu0 0.0
  %1599 = vmatpush1.msra.mxu0 %v1506
  %1600 = vmatprep.subr.mxu0 0.0
  %1601 = vmatpush1.msra.mxu0 0.0
  %1602 = vmatprep.subr.mxu0 0.0
  %1603 = vmatpush1.msra.mxu0 0.0
  %1604 = vmatprep.subr.mxu0 0.0
  %1605 = vmatpush1.msra.mxu0 0.0
  %1606 = vmatprep.subr.mxu0 0.0
  %1607 = vmatpush1.msra.mxu0 0.0
  %1608 = vmatprep.subr.mxu0 0.0
  %1609 = vmatpush1.msra.mxu0 0.0
  %1610 = vmatprep.subr.mxu0 0.0
  %1611 = vmatpush1.msra.mxu0 0.0
  %1612 = vmatprep.subr.mxu0 0.0
  %1613 = vmatpush1.msra.mxu0 0.0
  %1614 = vmatprep.subr.mxu0 0.0
  %1615 = vmatpush1.msra.mxu0 0.0
  %1616 = vmatprep.subr.mxu0 0.0
  %1617 = vmatpush1.msra.mxu0 0.0
  %1618 = vmatprep.subr.mxu0 0.0
  %1619 = vmatpush1.msra.mxu0 0.0
  %1620 = vmatprep.subr.mxu0 0.0
  %1621 = vmatpush1.msra.mxu0 0.0
  %1622 = vmatprep.subr.mxu0 0.0
  %1623 = vmatpush1.msra.mxu0 0.0
  %1624 = vmatprep.subr.mxu0 0.0
  %1625 = vmatpush1.msra.mxu0 0.0
  %1626 = vmatprep.subr.mxu0 0.0
  %1627 = vmatpush1.msra.mxu0 0.0
  %1628 = vmatprep.subr.mxu0 0.0
  %1629 = vmatpush1.msra.mxu0 0.0
  %1630 = vmatprep.subr.mxu0 0.0
  %1631 = vmatpush1.msra.mxu0 0.0
  %1632 = vmatprep.subr.mxu0 0.0
  %1633 = vmatpush1.msra.mxu0 0.0
  %1634 = vmatprep.subr.mxu0 0.0
  %1635 = vmatpush1.msra.mxu0 0.0
  %1636 = vmatprep.subr.mxu0 0.0
  %1637 = vmatpush1.msra.mxu0 0.0
  %1638 = vmatprep.subr.mxu0 0.0
  %1639 = vmatpush1.msra.mxu0 0.0
  %1640 = vmatprep.subr.mxu0 0.0
  %1641 = vmatpush1.msra.mxu0 0.0
  %1642 = vmatprep.subr.mxu0 0.0
  %1643 = vmatpush1.msra.mxu0 0.0
  %1644 = vmatprep.subr.mxu0 0.0
  %1645 = vmatpush1.msra.mxu0 0.0
  %1646 = vmatprep.subr.mxu0 0.0
  %1647 = vmatpush1.msra.mxu0 0.0
  %1648 = vmatprep.subr.mxu0 0.0
  %1649 = vmatpush1.msra.mxu0 0.0
  %1650 = vmatprep.subr.mxu0 0.0
  %1651 = vmatpush1.msra.mxu0 0.0
  %1652 = vmatprep.subr.mxu0 0.0
  %1653 = vmatpush1.msra.mxu0 0.0
  %1654 = vmatprep.subr.mxu0 0.0
  %1655 = vmatpush1.msra.mxu0 0.0
  %1656 = vmatprep.mubr.f32.mxu0 0.0
  %1657 = vmatmul.mubr.f32.gmra.mrb[0].mxu0 %v1590
  %v1658 = vpop.f32.mrb[0].mxu0
  %v1659 = vadd.f32 %v1584, %v1658
  %v1660 = vpop.f32.mrb[0].mxu0
  %1661 = vdwg.mxu0
  %v1662 = vld [vmem:[%s6] sm:$0x1]
  %v1664 = vlaneseq
  %v1665 = vshrl.u32 %v1664, 7
  %v1666 = vsub.s32 0, %v1665
  %v1667 = vrot.slane %v1662, %v1666
  %v1669 = vadd.f32 %v1659, %v1667
  %1670 = vst [vmem:[%s7] sm:$0xff] %v1669
  // Predicated region
  $region30: #{lstm_model_forward.1} parent=0 // pred_check
    _
  $region31: #{lstm_model_forward.1} parent=0 // pred_check_branch
    %1672 = sbr.rel (0) target = $region33
  $region32: #{lstm_model_forward.1} parent=0 // pred_region
    _
  $region33: #{lstm_model_forward.1} parent=0 // pred_fallthru
    _
  // Predicated region
  $region34: #{lstm_model_forward.1} parent=0 // pred_check
    _
  $region35: #{lstm_model_forward.1} parent=0 // pred_check_branch
    %1674 = sbr.rel (0) target = $region37
  $region36: #{lstm_model_forward.1} parent=0 // pred_region
    _
  $region37: #{lstm_model_forward.1} parent=0 // pred_fallthru
    _

</llo_original>
